<compile_context>
chip_gen: v6e
topology: v6e:2x2x1
jax: 0.10.0
libtpu: 0.0.40
codegen_flags: <defaults>
</compile_context>

<pallas_src>
import jax
import jax.numpy as jnp
from jax.experimental import pallas as pl
from jax.experimental.pallas import tpu as pltpu

LANE = 128
SUB_BF16 = 16  # bf16 sublane packing -> keep T a multiple of 16


# ---------------------------------------------------------------------------
# helpers
# ---------------------------------------------------------------------------
def _elu(x):
    return jnp.where(x > 0, x, jnp.exp(x) - 1.0)


def _ru(n, m):
    return -(-n // m) * m


def _rep(shape):
    """BlockSpec covering the whole (small, weight-like) array at every step."""
    nd = len(shape)
    return pl.BlockSpec(shape, lambda i, _nd=nd: (0,) * _nd)


def _vmem_limit_bytes():
    """Generation-aware scoped-VMEM limit (v5e/v6e: 128 MiB, v7x: 64 MiB)."""
    cap = 64 * 1024 * 1024  # assume the smallest (v7x) if we cannot query
    try:
        info = pltpu.get_tpu_info()
        cap = int(getattr(info, "vmem_capacity_bytes", cap))
    except Exception:
        pass
    return max(32 * 1024 * 1024, min(cap * 3 // 4, 96 * 1024 * 1024))


def _pick_block_bags(B, Tp, row_bytes, vmem_limit):
    """Bags per grid step: feed the MXU M dim while staying inside VMEM."""
    budget = vmem_limit // 2
    max_rows = max(Tp, budget // max(row_bytes, 1))
    target_rows = min(2048, max_rows)
    bb = min(B, max(1, target_rows // Tp))
    if bb < B:
        # When tiling the batch, keep the (bb, T)/(bb, C) blocks sublane legal.
        bb = max(8, (bb // 8) * 8)
    elif B >= 16 and B % 16 == 0 and (B // 2) * Tp >= 512:
        # Leave >= 2 grid steps so both v7x TensorCores get work.
        bb = B // 2
    n_blocks = -(-B // bb)
    return bb, n_blocks, n_blocks * bb


# ---------------------------------------------------------------------------
# Fused GatedMIL kernel: grid = (ceil(B / Bb),), Bb bags per step.
# ---------------------------------------------------------------------------
def gated_mil_kernel(len_ref, x_ref,
                     w1_ref, b1_ref, w2_ref, b2_ref,          # fused branch layers
                     wa1_ref, ba1_ref, wa2_ref,               # attention head
                     wc1_ref, bc1_ref, wc2_ref, bc2_ref,      # classifier (BN folded)
                     wc3_ref, bc3_ref,
                     attn_ref, probs_ref):
    bb, t_dim, e_dim = x_ref.shape
    mp = wa1_ref.shape[0]        # padded mil_dim
    dvp = wc1_ref.shape[0]       # padded value dim
    rows = bb * t_dim

    # Flatten bags -> rows (pure leading-dim merge: t_dim % 16 == 0, bf16).
    x2 = x_ref[...].reshape(rows, e_dim)

    # Fused first layer of tanh/sigmoid/value branches: x @ [W1t | W1s | W1v].
    h = _elu(jnp.dot(x2, w1_ref[...], preferred_element_type=jnp.float32)
             + b1_ref[...])

    # Fused second layer: [ht | hs | hv] @ blockdiag(W2t, W2s, W2v).
    z = jnp.dot(h.astype(jnp.bfloat16), w2_ref[...],
                preferred_element_type=jnp.float32) + b2_ref[...]
    tb = jnp.tanh(z[:, :mp])                      # 128-aligned lane slices
    sb = jax.nn.sigmoid(z[:, mp:2 * mp])
    vb = z[:, 2 * mp:]                            # (rows, Dvp)

    # Attention head: Linear -> ELU -> Linear(A -> 1).
    gate = (tb * sb).astype(jnp.bfloat16)
    a1 = _elu(jnp.dot(gate, wa1_ref[...], preferred_element_type=jnp.float32)
              + ba1_ref[...])                     # (rows, Ap)
    # (A -> 1) projection on the VPU/XLU; leading-dim split keeps layout.
    a1_3d = a1.reshape(bb, t_dim, a1.shape[-1])
    logits = jnp.sum(a1_3d * wa2_ref[...], axis=-1)       # (bb, T) lane-dense
    # NOTE: the scalar bias of the final attention projection cancels in softmax.

    # Masked lane-dense softmax over instances (mask built from lengths).
    # NOTE: a zero-length bag yields NaN (0/0), matching the PyTorch reference.
    iota_t = jax.lax.broadcasted_iota(jnp.int32, (bb, t_dim), 1)
    valid = iota_t < len_ref[...]                          # (bb, T)
    masked = jnp.where(valid, logits, -jnp.inf)
    mx = jnp.max(masked, axis=1, keepdims=True)
    ex = jnp.exp(masked - mx)
    attn = ex / jnp.sum(ex, axis=1, keepdims=True)
    attn_ref[...] = attn

    # Weighted bag embedding on VPU/XLU (avoids Bb serialized 1xTxDv MXU pushes).
    vb3 = vb.reshape(bb, t_dim, dvp)
    bag = jnp.sum(attn[:, :, None] * vb3, axis=1)          # (bb, Dvp)

    # Classification head (Dropout = identity, eval BatchNorm folded into wc2/bc2).
    h1 = _elu(jnp.dot(bag.astype(jnp.bfloat16), wc1_ref[...],
                      preferred_element_type=jnp.float32) + bc1_ref[...])
    h2 = _elu(jnp.dot(h1.astype(jnp.bfloat16), wc2_ref[...],
                      preferred_element_type=jnp.float32) + bc2_ref[...])
    lc = jnp.dot(h2.astype(jnp.bfloat16), wc3_ref[...],
                 preferred_element_type=jnp.float32) + bc3_ref[...]
    mc = jnp.max(lc, axis=1, keepdims=True)
    ec = jnp.exp(lc - mc)
    probs_ref[...] = ec / jnp.sum(ec, axis=1, keepdims=True)


# ---------------------------------------------------------------------------
# wrapper
# ---------------------------------------------------------------------------
@jax.jit
def gated_mil_forward(params, x, padding_lengths):
    p = params
    f32 = jnp.float32
    B, T, E = x.shape
    H = p["w1t"].shape[1]        # mil_hl_size
    M = p["w2t"].shape[1]        # mil_dim
    Dv = p["w2v"].shape[1]       # output_dim
    A = p["wa1"].shape[1]        # attention hidden (32)
    Hc = p["wc1"].shape[1]       # classifier_hl_size
    A2 = p["wc2"].shape[1]       # 32
    C = p["wc3"].shape[1]        # n_classes

    # Lane/sublane-padded packed widths.
    Tp = _ru(T, SUB_BF16)
    H3p = _ru(3 * H, LANE)
    Mp = _ru(M, LANE)
    Dvp = _ru(Dv, LANE)
    Ap = _ru(A, LANE)
    Hcp = _ru(Hc, LANE)
    A2p = _ru(A2, LANE)
    Zp = 2 * Mp + Dvp

    # ---- tile sizing (generation-aware VMEM budget) -------------------------
    vmem_limit = _vmem_limit_bytes()
    # rough per-row bytes: double-buffered bf16 x row + f32 intermediates.
    row_bytes = 2 * (E * 2) + 4 * (H3p + Zp + Ap + Dvp + Tp)
    bb, n_blocks, B_pad = _pick_block_bags(B, Tp, row_bytes, vmem_limit)

    if B_pad != B:
        x = jnp.pad(x, ((0, B_pad - B), (0, 0), (0, 0)))
        padding_lengths = jnp.pad(padding_lengths, (0, B_pad - B),
                                  constant_values=T)
    if Tp != T:
        x = jnp.pad(x, ((0, 0), (0, Tp - T), (0, 0)))

    lengths = padding_lengths.astype(jnp.int32).reshape(B_pad, 1)
    x_bf = x.astype(jnp.bfloat16)    # ideally x already arrives in bf16

    # ---- weight packing (tiny, fused by XLA) --------------------------------
    w1 = jnp.zeros((E, H3p), f32)
    w1 = w1.at[:, 0:H].set(p["w1t"]).at[:, H:2 * H].set(p["w1s"]) \
           .at[:, 2 * H:3 * H].set(p["w1v"])
    b1 = jnp.zeros((1, H3p), f32)
    b1 = b1.at[:, 0:H].set(p["b1t"]).at[:, H:2 * H].set(p["b1s"]) \
           .at[:, 2 * H:3 * H].set(p["b1v"])

    w2 = jnp.zeros((H3p, Zp), f32)                               # block-diagonal
    w2 = w2.at[0:H, 0:M].set(p["w2t"])
    w2 = w2.at[H:2 * H, Mp:Mp + M].set(p["w2s"])
    w2 = w2.at[2 * H:3 * H, 2 * Mp:2 * Mp + Dv].set(p["w2v"])
    b2 = jnp.zeros((1, Zp), f32)
    b2 = b2.at[:, 0:M].set(p["b2t"]).at[:, Mp:Mp + M].set(p["b2s"]) \
           .at[:, 2 * Mp:2 * Mp + Dv].set(p["b2v"])

    wa1 = jnp.zeros((Mp, Ap), f32).at[:M, :A].set(p["wa1"])
    ba1 = jnp.zeros((1, Ap), f32).at[:, :A].set(p["ba1"])
    wa2 = jnp.zeros((1, Ap), f32).at[:, :A].set(p["wa2"].T)      # lane-reduce row
    # p["ba2"] is a constant added to every logit -> cancels in the softmax.

    # eval-mode BatchNorm folded into the following Linear (wc2 / bc2).
    bn_s = p["bn_gamma"] * jax.lax.rsqrt(p["bn_rvar"] + 1e-5)    # (1, Hc)
    bn_t = p["bn_beta"] - p["bn_rmean"] * bn_s
    wc2f = p["wc2"] * bn_s.reshape(Hc, 1)
    bc2f = bn_t @ p["wc2"] + p["bc2"]

    wc1 = jnp.zeros((Dvp, Hcp), f32).at[:Dv, :Hc].set(p["wc1"])
    bc1 = jnp.zeros((1, Hcp), f32).at[:, :Hc].set(p["bc1"])
    wc2 = jnp.zeros((Hcp, A2p), f32).at[:Hc, :A2].set(wc2f)
    bc2 = jnp.zeros((1, A2p), f32).at[:, :A2].set(bc2f)
    wc3 = jnp.zeros((A2p, C), f32).at[:A2, :].set(p["wc3"])
    bc3 = p["bc3"]

    bf = jnp.bfloat16
    attn, probs = pl.pallas_call(
        gated_mil_kernel,
        out_shape=(
            jax.ShapeDtypeStruct((B_pad, Tp), jnp.float32),
            jax.ShapeDtypeStruct((B_pad, C), jnp.float32),
        ),
        grid=(n_blocks,),
        in_specs=[
            pl.BlockSpec((bb, 1), lambda i: (i, 0)),             # lengths
            pl.BlockSpec((bb, Tp, E), lambda i: (i, 0, 0)),      # x (bf16)
            _rep((E, H3p)), _rep((1, H3p)),
            _rep((H3p, Zp)), _rep((1, Zp)),
            _rep((Mp, Ap)), _rep((1, Ap)), _rep((1, Ap)),
            _rep((Dvp, Hcp)), _rep((1, Hcp)),
            _rep((Hcp, A2p)), _rep((1, A2p)),
            _rep((A2p, C)), _rep((1, C)),
        ],
        out_specs=(
            pl.BlockSpec((bb, Tp), lambda i: (i, 0)),            # attention (lane-dense)
            pl.BlockSpec((bb, C), lambda i: (i, 0)),             # class probabilities
        ),
        compiler_params=pltpu.CompilerParams(
            dimension_semantics=("parallel",),
            vmem_limit_bytes=int(vmem_limit),
        ),
    )(lengths, x_bf,
      w1.astype(bf), b1, w2.astype(bf), b2,
      wa1.astype(bf), ba1, wa2,
      wc1.astype(bf), bc1, wc2.astype(bf), bc2, wc3.astype(bf), bc3)

    attn = attn[:B, :T]
    probs = probs[:B]
    return probs, attn[:, None, :]       # matches (pred_probs, attn.unsqueeze(1))


# ---------------------------------------------------------------------------
# pure-JAX reference (for correctness check)
# ---------------------------------------------------------------------------
def ref_forward(params, x, padding_lengths):
    p = params
    t = jnp.tanh(_elu(x @ p["w1t"] + p["b1t"]) @ p["w2t"] + p["b2t"])
    s = jax.nn.sigmoid(_elu(x @ p["w1s"] + p["b1s"]) @ p["w2s"] + p["b2s"])
    v = _elu(x @ p["w1v"] + p["b1v"]) @ p["w2v"] + p["b2v"]
    a = _elu((t * s) @ p["wa1"] + p["ba1"]) @ p["wa2"] + p["ba2"]
    logits = a[..., 0]
    T = x.shape[1]
    mask = jnp.arange(T)[None, :] < padding_lengths[:, None]
    logits = jnp.where(mask, logits, -jnp.inf)
    attn = jax.nn.softmax(logits, axis=1)
    bag = jnp.einsum("bt,btd->bd", attn, v)
    h = _elu(bag @ p["wc1"] + p["bc1"])
    h = (h - p["bn_rmean"]) * jax.lax.rsqrt(p["bn_rvar"] + 1e-5) * p["bn_gamma"] + p["bn_beta"]
    h = _elu(h @ p["wc2"] + p["bc2"])
    probs = jax.nn.softmax(h @ p["wc3"] + p["bc3"], axis=1)
    return probs, attn[:, None, :]


# ---------------------------------------------------------------------------
# deterministic parameter init (weights stored as (in, out) = PyTorch W.T)
# ---------------------------------------------------------------------------
def init_params(key, embed_dim, mil_hl, mil_dim, output_dim, n_classes, clf_hl):
    def linear(k, fan_in, fan_out):
        k1, k2 = jax.random.split(k)
        w = jax.random.normal(k1, (fan_in, fan_out), jnp.float32) * 0.1
        b = jax.random.normal(k2, (1, fan_out), jnp.float32) * 0.1
        return w, b

    keys = jax.random.split(key, 10)
    p = {}
    p["w1t"], p["b1t"] = linear(keys[0], embed_dim, mil_hl)
    p["w2t"], p["b2t"] = linear(keys[1], mil_hl, mil_dim)
    p["w1s"], p["b1s"] = linear(keys[2], embed_dim, mil_hl)
    p["w2s"], p["b2s"] = linear(keys[3], mil_hl, mil_dim)
    p["w1v"], p["b1v"] = linear(keys[4], embed_dim, mil_hl)
    p["w2v"], p["b2v"] = linear(keys[5], mil_hl, output_dim)
    p["wa1"], p["ba1"] = linear(keys[6], mil_dim, 32)
    p["wa2"], p["ba2"] = linear(keys[7], 32, 1)
    p["wc1"], p["bc1"] = linear(keys[8], output_dim, clf_hl)
    kc2, kc3 = jax.random.split(keys[9])
    p["wc2"], p["bc2"] = linear(kc2, clf_hl, 32)
    p["wc3"], p["bc3"] = linear(kc3, 32, n_classes)
    # BatchNorm1d(clf_hl) at PyTorch init / eval
    p["bn_gamma"] = jnp.ones((1, clf_hl), jnp.float32)
    p["bn_beta"] = jnp.zeros((1, clf_hl), jnp.float32)
    p["bn_rmean"] = jnp.zeros((1, clf_hl), jnp.float32)
    p["bn_rvar"] = jnp.ones((1, clf_hl), jnp.float32)
    return p


if __name__ == "__main__":
    B, T = 2, 8
    embed_dim, mil_hl_size, mil_dim = 32, 32, 16
    output_dim, n_classes, classifier_hl_size = 32, 4, 64

    key = jax.random.PRNGKey(0)
    kp, kx = jax.random.split(key)
    params = init_params(kp, embed_dim, mil_hl_size, mil_dim,
                         output_dim, n_classes, classifier_hl_size)
    x = jax.random.normal(kx, (B, T, embed_dim), jnp.float32)
    padding_lengths = jnp.array([8, 5], dtype=jnp.int32)

    probs, attn = gated_mil_forward(params, x, padding_lengths)
    jax.block_until_ready((probs, attn))

    probs_ref, attn_ref = ref_forward(params, x, padding_lengths)
    assert probs.shape == (B, n_classes) and attn.shape == (B, 1, T)
    assert jnp.allclose(probs, probs_ref, atol=2e-2, rtol=5e-2)
    assert jnp.allclose(attn, attn_ref, atol=2e-2, rtol=5e-2)

    print("KERNEL_OK")
</pallas_src>

<mosaic_0001>
module attributes {stable_mosaic.version = 11 : i64} {
  func.func @gated_mil_kernel(%arg0: i32, %arg1: memref<2x1xi32, #tpu.memory_space<vmem>>, %arg2: memref<2x16x32xbf16, #tpu.memory_space<vmem>>, %arg3: memref<32x128xbf16, #tpu.memory_space<vmem>>, %arg4: memref<1x128xf32, #tpu.memory_space<vmem>>, %arg5: memref<128x384xbf16, #tpu.memory_space<vmem>>, %arg6: memref<1x384xf32, #tpu.memory_space<vmem>>, %arg7: memref<128x128xbf16, #tpu.memory_space<vmem>>, %arg8: memref<1x128xf32, #tpu.memory_space<vmem>>, %arg9: memref<1x128xf32, #tpu.memory_space<vmem>>, %arg10: memref<128x128xbf16, #tpu.memory_space<vmem>>, %arg11: memref<1x128xf32, #tpu.memory_space<vmem>>, %arg12: memref<128x128xbf16, #tpu.memory_space<vmem>>, %arg13: memref<1x128xf32, #tpu.memory_space<vmem>>, %arg14: memref<128x4xbf16, #tpu.memory_space<vmem>>, %arg15: memref<1x4xf32, #tpu.memory_space<vmem>>, %arg16: memref<2x16xf32, #tpu.memory_space<vmem>>, %arg17: memref<2x4xf32, #tpu.memory_space<vmem>>) attributes {dimension_semantics = [#tpu.dimension_semantics<parallel>], iteration_bounds = array<i64: 1>, scalar_prefetch = 0 : i64, scratch_operands = 0 : i64, tpu.core_type = #tpu.core_type<tc>, window_params = [{transform_indices = @transform_0, window_bounds = array<i64: 2, 1>}, {transform_indices = @transform_1, window_bounds = array<i64: 2, 16, 32>}, {pipeline_mode = #tpu.pipeline_mode<synchronous>, transform_indices = @transform_2, window_bounds = array<i64: 32, 128>}, {pipeline_mode = #tpu.pipeline_mode<synchronous>, transform_indices = @transform_3, window_bounds = array<i64: 1, 128>}, {pipeline_mode = #tpu.pipeline_mode<synchronous>, transform_indices = @transform_4, window_bounds = array<i64: 128, 384>}, {pipeline_mode = #tpu.pipeline_mode<synchronous>, transform_indices = @transform_5, window_bounds = array<i64: 1, 384>}, {pipeline_mode = #tpu.pipeline_mode<synchronous>, transform_indices = @transform_6, window_bounds = array<i64: 128, 128>}, {pipeline_mode = #tpu.pipeline_mode<synchronous>, transform_indices = @transform_7, window_bounds = array<i64: 1, 128>}, {pipeline_mode = #tpu.pipeline_mode<synchronous>, transform_indices = @transform_8, window_bounds = array<i64: 1, 128>}, {pipeline_mode = #tpu.pipeline_mode<synchronous>, transform_indices = @transform_9, window_bounds = array<i64: 128, 128>}, {pipeline_mode = #tpu.pipeline_mode<synchronous>, transform_indices = @transform_10, window_bounds = array<i64: 1, 128>}, {pipeline_mode = #tpu.pipeline_mode<synchronous>, transform_indices = @transform_11, window_bounds = array<i64: 128, 128>}, {pipeline_mode = #tpu.pipeline_mode<synchronous>, transform_indices = @transform_12, window_bounds = array<i64: 1, 128>}, {pipeline_mode = #tpu.pipeline_mode<synchronous>, transform_indices = @transform_13, window_bounds = array<i64: 128, 4>}, {pipeline_mode = #tpu.pipeline_mode<synchronous>, transform_indices = @transform_14, window_bounds = array<i64: 1, 4>}, {transform_indices = @transform_15, window_bounds = array<i64: 2, 16>}, {transform_indices = @transform_16, window_bounds = array<i64: 2, 4>}]} {
    %c0 = arith.constant 0 : index
    %c0_0 = arith.constant 0 : index
    %c0_1 = arith.constant 0 : index
    %0 = vector.load %arg2[%c0, %c0_0, %c0_1] : memref<2x16x32xbf16, #tpu.memory_space<vmem>>, vector<2x16x32xbf16>
    %1 = vector.shape_cast %0 : vector<2x16x32xbf16> to vector<32x32xbf16>
    %c0_2 = arith.constant 0 : index
    %c0_3 = arith.constant 0 : index
    %2 = vector.load %arg3[%c0_2, %c0_3] : memref<32x128xbf16, #tpu.memory_space<vmem>>, vector<32x128xbf16>
    %cst = arith.constant dense<0.000000e+00> : vector<32x128xf32>
    %3 = tpu.matmul %1, %2, %cst {dimension_numbers = #tpu.dot_dimension_numbers<[1], [0], [0], [1], [0, 0, 1, 1], [], []>} : vector<32x32xbf16>, vector<32x128xbf16>, vector<32x128xf32> -> vector<32x128xf32>
    %c0_4 = arith.constant 0 : index
    %c0_5 = arith.constant 0 : index
    %4 = vector.load %arg4[%c0_4, %c0_5] : memref<1x128xf32, #tpu.memory_space<vmem>>, vector<1x128xf32>
    %5 = vector.broadcast %4 : vector<1x128xf32> to vector<32x128xf32>
    %6 = arith.addf %3, %5 : vector<32x128xf32>
    %cst_6 = arith.constant 0.000000e+00 : f32
    %7 = vector.broadcast %cst_6 : f32 to vector<32x128xf32>
    %8 = arith.cmpf ogt, %6, %7 : vector<32x128xf32>
    %9 = math.exp %6 : vector<32x128xf32>
    %cst_7 = arith.constant 1.000000e+00 : f32
    %10 = vector.broadcast %cst_7 : f32 to vector<32x128xf32>
    %11 = arith.subf %9, %10 : vector<32x128xf32>
    %12 = arith.select %8, %6, %11 : vector<32x128xi1>, vector<32x128xf32>
    %13 = arith.truncf %12 : vector<32x128xf32> to vector<32x128xbf16>
    %c0_8 = arith.constant 0 : index
    %c0_9 = arith.constant 0 : index
    %14 = vector.load %arg5[%c0_8, %c0_9] : memref<128x384xbf16, #tpu.memory_space<vmem>>, vector<128x384xbf16>
    %cst_10 = arith.constant dense<0.000000e+00> : vector<32x384xf32>
    %15 = tpu.matmul %13, %14, %cst_10 {dimension_numbers = #tpu.dot_dimension_numbers<[1], [0], [0], [1], [0, 0, 1, 1], [], []>} : vector<32x128xbf16>, vector<128x384xbf16>, vector<32x384xf32> -> vector<32x384xf32>
    %c0_11 = arith.constant 0 : index
    %c0_12 = arith.constant 0 : index
    %16 = vector.load %arg6[%c0_11, %c0_12] : memref<1x384xf32, #tpu.memory_space<vmem>>, vector<1x384xf32>
    %17 = vector.broadcast %16 : vector<1x384xf32> to vector<32x384xf32>
    %18 = arith.addf %15, %17 : vector<32x384xf32>
    %19 = vector.extract_strided_slice %18 {offsets = [0, 0], sizes = [32, 128], strides = [1, 1]} : vector<32x384xf32> to vector<32x128xf32>
    %20 = math.tanh %19 : vector<32x128xf32>
    %21 = vector.extract_strided_slice %18 {offsets = [0, 128], sizes = [32, 128], strides = [1, 1]} : vector<32x384xf32> to vector<32x128xf32>
    %22 = arith.negf %21 : vector<32x128xf32>
    %23 = math.exp %22 : vector<32x128xf32>
    %cst_13 = arith.constant 1.000000e+00 : f32
    %24 = vector.broadcast %cst_13 : f32 to vector<32x128xf32>
    %25 = arith.addf %24, %23 : vector<32x128xf32>
    %26 = arith.divf %24, %25 : vector<32x128xf32>
    %27 = vector.extract_strided_slice %18 {offsets = [0, 256], sizes = [32, 128], strides = [1, 1]} : vector<32x384xf32> to vector<32x128xf32>
    %28 = arith.mulf %20, %26 : vector<32x128xf32>
    %29 = arith.truncf %28 : vector<32x128xf32> to vector<32x128xbf16>
    %c0_14 = arith.constant 0 : index
    %c0_15 = arith.constant 0 : index
    %30 = vector.load %arg7[%c0_14, %c0_15] : memref<128x128xbf16, #tpu.memory_space<vmem>>, vector<128x128xbf16>
    %cst_16 = arith.constant dense<0.000000e+00> : vector<32x128xf32>
    %31 = tpu.matmul %29, %30, %cst_16 {dimension_numbers = #tpu.dot_dimension_numbers<[1], [0], [0], [1], [0, 0, 1, 1], [], []>} : vector<32x128xbf16>, vector<128x128xbf16>, vector<32x128xf32> -> vector<32x128xf32>
    %c0_17 = arith.constant 0 : index
    %c0_18 = arith.constant 0 : index
    %32 = vector.load %arg8[%c0_17, %c0_18] : memref<1x128xf32, #tpu.memory_space<vmem>>, vector<1x128xf32>
    %33 = vector.broadcast %32 : vector<1x128xf32> to vector<32x128xf32>
    %34 = arith.addf %31, %33 : vector<32x128xf32>
    %cst_19 = arith.constant 0.000000e+00 : f32
    %35 = vector.broadcast %cst_19 : f32 to vector<32x128xf32>
    %36 = arith.cmpf ogt, %34, %35 : vector<32x128xf32>
    %37 = math.exp %34 : vector<32x128xf32>
    %cst_20 = arith.constant 1.000000e+00 : f32
    %38 = vector.broadcast %cst_20 : f32 to vector<32x128xf32>
    %39 = arith.subf %37, %38 : vector<32x128xf32>
    %40 = arith.select %36, %34, %39 : vector<32x128xi1>, vector<32x128xf32>
    %41 = vector.shape_cast %40 : vector<32x128xf32> to vector<2x16x128xf32>
    %c0_21 = arith.constant 0 : index
    %c0_22 = arith.constant 0 : index
    %42 = vector.load %arg9[%c0_21, %c0_22] : memref<1x128xf32, #tpu.memory_space<vmem>>, vector<1x128xf32>
    %43 = vector.shape_cast %42 : vector<1x128xf32> to vector<1x1x128xf32>
    %44 = vector.broadcast %43 : vector<1x1x128xf32> to vector<2x16x128xf32>
    %45 = arith.mulf %41, %44 : vector<2x16x128xf32>
    %cst_23 = arith.constant dense<0.000000e+00> : vector<2x16xf32>
    %46 = vector.multi_reduction <add>, %45, %cst_23 [2] : vector<2x16x128xf32> to vector<2x16xf32>
    %47 = tpu.iota {dimensions = array<i32: 1>} : vector<2x16xi32>
    %c0_24 = arith.constant 0 : index
    %c0_25 = arith.constant 0 : index
    %48 = vector.load %arg1[%c0_24, %c0_25] : memref<2x1xi32, #tpu.memory_space<vmem>>, vector<2x1xi32>
    %49 = vector.broadcast %48 : vector<2x1xi32> to vector<2x16xi32>
    %50 = arith.cmpi slt, %47, %49 : vector<2x16xi32>
    %cst_26 = arith.constant 0xFF800000 : f32
    %51 = vector.broadcast %cst_26 : f32 to vector<2x16xf32>
    %52 = arith.select %50, %46, %51 : vector<2x16xi1>, vector<2x16xf32>
    %cst_27 = arith.constant dense<0xFF800000> : vector<2xf32>
    %53 = vector.multi_reduction <maximumf>, %52, %cst_27 [1] : vector<2x16xf32> to vector<2xf32>
    %54 = vector.shape_cast %53 : vector<2xf32> to vector<2x1xf32>
    %55 = vector.broadcast %54 : vector<2x1xf32> to vector<2x16xf32>
    %56 = arith.subf %52, %55 : vector<2x16xf32>
    %57 = math.exp %56 : vector<2x16xf32>
    %cst_28 = arith.constant dense<0.000000e+00> : vector<2xf32>
    %58 = vector.multi_reduction <add>, %57, %cst_28 [1] : vector<2x16xf32> to vector<2xf32>
    %59 = vector.shape_cast %58 : vector<2xf32> to vector<2x1xf32>
    %60 = vector.broadcast %59 : vector<2x1xf32> to vector<2x16xf32>
    %61 = arith.divf %57, %60 : vector<2x16xf32>
    %c0_29 = arith.constant 0 : index
    %c0_30 = arith.constant 0 : index
    %62 = vector.load %arg16[%c0_29, %c0_30] : memref<2x16xf32, #tpu.memory_space<vmem>>, vector<2x16xf32>
    tpu.vector_store %arg16[%c0_29, %c0_30], %61 {strides = array<i32>} : memref<2x16xf32, #tpu.memory_space<vmem>>, vector<2x16xf32>,
    %63 = vector.shape_cast %27 : vector<32x128xf32> to vector<2x16x128xf32>
    %64 = vector.shape_cast %61 : vector<2x16xf32> to vector<2x16x1xf32>
    %65 = vector.broadcast %64 : vector<2x16x1xf32> to vector<2x16x128xf32>
    %66 = arith.mulf %65, %63 : vector<2x16x128xf32>
    %cst_31 = arith.constant dense<0.000000e+00> : vector<2x128xf32>
    %67 = vector.multi_reduction <add>, %66, %cst_31 [1] : vector<2x16x128xf32> to vector<2x128xf32>
    %68 = arith.truncf %67 : vector<2x128xf32> to vector<2x128xbf16>
    %c0_32 = arith.constant 0 : index
    %c0_33 = arith.constant 0 : index
    %69 = vector.load %arg10[%c0_32, %c0_33] : memref<128x128xbf16, #tpu.memory_space<vmem>>, vector<128x128xbf16>
    %cst_34 = arith.constant dense<0.000000e+00> : vector<2x128xf32>
    %70 = tpu.matmul %68, %69, %cst_34 {dimension_numbers = #tpu.dot_dimension_numbers<[1], [0], [0], [1], [0, 0, 1, 1], [], []>} : vector<2x128xbf16>, vector<128x128xbf16>, vector<2x128xf32> -> vector<2x128xf32>
    %c0_35 = arith.constant 0 : index
    %c0_36 = arith.constant 0 : index
    %71 = vector.load %arg11[%c0_35, %c0_36] : memref<1x128xf32, #tpu.memory_space<vmem>>, vector<1x128xf32>
    %72 = vector.broadcast %71 : vector<1x128xf32> to vector<2x128xf32>
    %73 = arith.addf %70, %72 : vector<2x128xf32>
    %cst_37 = arith.constant 0.000000e+00 : f32
    %74 = vector.broadcast %cst_37 : f32 to vector<2x128xf32>
    %75 = arith.cmpf ogt, %73, %74 : vector<2x128xf32>
    %76 = math.exp %73 : vector<2x128xf32>
    %cst_38 = arith.constant 1.000000e+00 : f32
    %77 = vector.broadcast %cst_38 : f32 to vector<2x128xf32>
    %78 = arith.subf %76, %77 : vector<2x128xf32>
    %79 = arith.select %75, %73, %78 : vector<2x128xi1>, vector<2x128xf32>
    %80 = arith.truncf %79 : vector<2x128xf32> to vector<2x128xbf16>
    %c0_39 = arith.constant 0 : index
    %c0_40 = arith.constant 0 : index
    %81 = vector.load %arg12[%c0_39, %c0_40] : memref<128x128xbf16, #tpu.memory_space<vmem>>, vector<128x128xbf16>
    %cst_41 = arith.constant dense<0.000000e+00> : vector<2x128xf32>
    %82 = tpu.matmul %80, %81, %cst_41 {dimension_numbers = #tpu.dot_dimension_numbers<[1], [0], [0], [1], [0, 0, 1, 1], [], []>} : vector<2x128xbf16>, vector<128x128xbf16>, vector<2x128xf32> -> vector<2x128xf32>
    %c0_42 = arith.constant 0 : index
    %c0_43 = arith.constant 0 : index
    %83 = vector.load %arg13[%c0_42, %c0_43] : memref<1x128xf32, #tpu.memory_space<vmem>>, vector<1x128xf32>
    %84 = vector.broadcast %83 : vector<1x128xf32> to vector<2x128xf32>
    %85 = arith.addf %82, %84 : vector<2x128xf32>
    %cst_44 = arith.constant 0.000000e+00 : f32
    %86 = vector.broadcast %cst_44 : f32 to vector<2x128xf32>
    %87 = arith.cmpf ogt, %85, %86 : vector<2x128xf32>
    %88 = math.exp %85 : vector<2x128xf32>
    %cst_45 = arith.constant 1.000000e+00 : f32
    %89 = vector.broadcast %cst_45 : f32 to vector<2x128xf32>
    %90 = arith.subf %88, %89 : vector<2x128xf32>
    %91 = arith.select %87, %85, %90 : vector<2x128xi1>, vector<2x128xf32>
    %92 = arith.truncf %91 : vector<2x128xf32> to vector<2x128xbf16>
    %c0_46 = arith.constant 0 : index
    %c0_47 = arith.constant 0 : index
    %93 = vector.load %arg14[%c0_46, %c0_47] : memref<128x4xbf16, #tpu.memory_space<vmem>>, vector<128x4xbf16>
    %cst_48 = arith.constant dense<0.000000e+00> : vector<2x4xf32>
    %94 = tpu.matmul %92, %93, %cst_48 {dimension_numbers = #tpu.dot_dimension_numbers<[1], [0], [0], [1], [0, 0, 1, 1], [], []>} : vector<2x128xbf16>, vector<128x4xbf16>, vector<2x4xf32> -> vector<2x4xf32>
    %c0_49 = arith.constant 0 : index
    %c0_50 = arith.constant 0 : index
    %95 = vector.load %arg15[%c0_49, %c0_50] : memref<1x4xf32, #tpu.memory_space<vmem>>, vector<1x4xf32>
    %96 = vector.broadcast %95 : vector<1x4xf32> to vector<2x4xf32>
    %97 = arith.addf %94, %96 : vector<2x4xf32>
    %cst_51 = arith.constant dense<0xFF800000> : vector<2xf32>
    %98 = vector.multi_reduction <maximumf>, %97, %cst_51 [1] : vector<2x4xf32> to vector<2xf32>
    %99 = vector.shape_cast %98 : vector<2xf32> to vector<2x1xf32>
    %100 = vector.broadcast %99 : vector<2x1xf32> to vector<2x4xf32>
    %101 = arith.subf %97, %100 : vector<2x4xf32>
    %102 = math.exp %101 : vector<2x4xf32>
    %cst_52 = arith.constant dense<0.000000e+00> : vector<2xf32>
    %103 = vector.multi_reduction <add>, %102, %cst_52 [1] : vector<2x4xf32> to vector<2xf32>
    %104 = vector.shape_cast %103 : vector<2xf32> to vector<2x1xf32>
    %105 = vector.broadcast %104 : vector<2x1xf32> to vector<2x4xf32>
    %106 = arith.divf %102, %105 : vector<2x4xf32>
    %c0_53 = arith.constant 0 : index
    %c0_54 = arith.constant 0 : index
    %107 = vector.load %arg17[%c0_53, %c0_54] : memref<2x4xf32, #tpu.memory_space<vmem>>, vector<2x4xf32>
    tpu.vector_store %arg17[%c0_53, %c0_54], %106 {strides = array<i32>} : memref<2x4xf32, #tpu.memory_space<vmem>>, vector<2x4xf32>,
    return
  }
  func.func @transform_0(%arg0: i32) -> (i32, i32) {
    %c0_i32 = arith.constant 0 : i32
    %c0_i32_0 = arith.constant 0 : i32
    return %arg0, %c0_i32 : i32, i32
  }
  func.func @transform_1(%arg0: i32) -> (i32, i32, i32) {
    %c0_i32 = arith.constant 0 : i32
    %c0_i32_0 = arith.constant 0 : i32
    %c0_i32_1 = arith.constant 0 : i32
    return %arg0, %c0_i32, %c0_i32_0 : i32, i32, i32
  }
  func.func @transform_2(%arg0: i32) -> (i32, i32) {
    %c0_i32 = arith.constant 0 : i32
    %c0_i32_0 = arith.constant 0 : i32
    %c0_i32_1 = arith.constant 0 : i32
    return %c0_i32, %c0_i32_0 : i32, i32
  }
  func.func @transform_3(%arg0: i32) -> (i32, i32) {
    %c0_i32 = arith.constant 0 : i32
    %c0_i32_0 = arith.constant 0 : i32
    %c0_i32_1 = arith.constant 0 : i32
    return %c0_i32, %c0_i32_0 : i32, i32
  }
  func.func @transform_4(%arg0: i32) -> (i32, i32) {
    %c0_i32 = arith.constant 0 : i32
    %c0_i32_0 = arith.constant 0 : i32
    %c0_i32_1 = arith.constant 0 : i32
    return %c0_i32, %c0_i32_0 : i32, i32
  }
  func.func @transform_5(%arg0: i32) -> (i32, i32) {
    %c0_i32 = arith.constant 0 : i32
    %c0_i32_0 = arith.constant 0 : i32
    %c0_i32_1 = arith.constant 0 : i32
    return %c0_i32, %c0_i32_0 : i32, i32
  }
  func.func @transform_6(%arg0: i32) -> (i32, i32) {
    %c0_i32 = arith.constant 0 : i32
    %c0_i32_0 = arith.constant 0 : i32
    %c0_i32_1 = arith.constant 0 : i32
    return %c0_i32, %c0_i32_0 : i32, i32
  }
  func.func @transform_7(%arg0: i32) -> (i32, i32) {
    %c0_i32 = arith.constant 0 : i32
    %c0_i32_0 = arith.constant 0 : i32
    %c0_i32_1 = arith.constant 0 : i32
    return %c0_i32, %c0_i32_0 : i32, i32
  }
  func.func @transform_8(%arg0: i32) -> (i32, i32) {
    %c0_i32 = arith.constant 0 : i32
    %c0_i32_0 = arith.constant 0 : i32
    %c0_i32_1 = arith.constant 0 : i32
    return %c0_i32, %c0_i32_0 : i32, i32
  }
  func.func @transform_9(%arg0: i32) -> (i32, i32) {
    %c0_i32 = arith.constant 0 : i32
    %c0_i32_0 = arith.constant 0 : i32
    %c0_i32_1 = arith.constant 0 : i32
    return %c0_i32, %c0_i32_0 : i32, i32
  }
  func.func @transform_10(%arg0: i32) -> (i32, i32) {
    %c0_i32 = arith.constant 0 : i32
    %c0_i32_0 = arith.constant 0 : i32
    %c0_i32_1 = arith.constant 0 : i32
    return %c0_i32, %c0_i32_0 : i32, i32
  }
  func.func @transform_11(%arg0: i32) -> (i32, i32) {
    %c0_i32 = arith.constant 0 : i32
    %c0_i32_0 = arith.constant 0 : i32
    %c0_i32_1 = arith.constant 0 : i32
    return %c0_i32, %c0_i32_0 : i32, i32
  }
  func.func @transform_12(%arg0: i32) -> (i32, i32) {
    %c0_i32 = arith.constant 0 : i32
    %c0_i32_0 = arith.constant 0 : i32
    %c0_i32_1 = arith.constant 0 : i32
    return %c0_i32, %c0_i32_0 : i32, i32
  }
  func.func @transform_13(%arg0: i32) -> (i32, i32) {
    %c0_i32 = arith.constant 0 : i32
    %c0_i32_0 = arith.constant 0 : i32
    %c0_i32_1 = arith.constant 0 : i32
    return %c0_i32, %c0_i32_0 : i32, i32
  }
  func.func @transform_14(%arg0: i32) -> (i32, i32) {
    %c0_i32 = arith.constant 0 : i32
    %c0_i32_0 = arith.constant 0 : i32
    %c0_i32_1 = arith.constant 0 : i32
    return %c0_i32, %c0_i32_0 : i32, i32
  }
  func.func @transform_15(%arg0: i32) -> (i32, i32) {
    %c0_i32 = arith.constant 0 : i32
    %c0_i32_0 = arith.constant 0 : i32
    return %arg0, %c0_i32 : i32, i32
  }
  func.func @transform_16(%arg0: i32) -> (i32, i32) {
    %c0_i32 = arith.constant 0 : i32
    %c0_i32_0 = arith.constant 0 : i32
    return %arg0, %c0_i32 : i32, i32
  }
}

</mosaic_0001>

<llo_original>
// kernel: gated_mil_forward.1
$region0: #{gated_mil_forward.1}
  #allocation0 [shape = 'u32[]', space=smem, size = 0x4, offset = 0x4, fixed_abs, tag = 'smem constant byte address 0x4 - core index']
  #allocation1 [shape = 'u32[144,128]{1,0:T(1,128)}', space=vmem, size = 0x12000, scoped, tag = 'internal scratch']
  %s0 = inlined_call_operand.vmem [shape: s32[2,1], index: 0, kind: input, shape index: {}]
  %s1 = inlined_call_operand.vmem [shape: bf16[2,16,32], index: 1, kind: input, shape index: {}]
  %s2 = inlined_call_operand.vmem [shape: bf16[32,128], index: 2, kind: input, shape index: {}]
  %s3 = inlined_call_operand.vmem [shape: f32[1,128], index: 3, kind: input, shape index: {}]
  %s4 = inlined_call_operand.vmem [shape: bf16[128,384], index: 4, kind: input, shape index: {}]
  %s5 = inlined_call_operand.vmem [shape: f32[1,384], index: 5, kind: input, shape index: {}]
  %s6 = inlined_call_operand.vmem [shape: bf16[128,128], index: 6, kind: input, shape index: {}]
  %s7 = inlined_call_operand.vmem [shape: f32[1,128], index: 7, kind: input, shape index: {}]
  %s8 = inlined_call_operand.vmem [shape: f32[1,128], index: 8, kind: input, shape index: {}]
  %s9 = inlined_call_operand.vmem [shape: bf16[128,128], index: 9, kind: input, shape index: {}]
  %s10 = inlined_call_operand.vmem [shape: f32[1,128], index: 10, kind: input, shape index: {}]
  %s11 = inlined_call_operand.vmem [shape: bf16[128,128], index: 11, kind: input, shape index: {}]
  %s12 = inlined_call_operand.vmem [shape: f32[1,128], index: 12, kind: input, shape index: {}]
  %s13 = inlined_call_operand.vmem [shape: bf16[128,4], index: 13, kind: input, shape index: {}]
  %s14 = inlined_call_operand.vmem [shape: f32[1,4], index: 14, kind: input, shape index: {}]
  %s15 = inlined_call_operand.hbm [shape: f32[2,16], index: 15, kind: output, shape index: {0}]
  %s16 = inlined_call_operand.hbm [shape: f32[2,4], index: 16, kind: output, shape index: {1}]
  %17 = xla_tuple %s15, %s16
  %s18 = sld [smem:[#allocation0]]
  $region78: #{gated_mil_forward.1} parent=0
    _
  %s20 = ssub.s32 1, %s18
  %s21 = scalar_select 0, %s20, %s18
  $region1: #{gated_mil_forward.1} parent=0
    #allocation2 [shape = 'u8[1024]{0}', space=vmem, size = 0x400, scoped, tag = 'output window, operand 0, single buffered']
    #allocation3 [shape = 's32[1]{0}', space=sflag, size = 0x4, scoped, tag = 'scoped memory for gated_mil_forward.1']
    #allocation4 [shape = 'u8[1024]{0}', space=vmem, size = 0x400, scoped, tag = 'output window, operand 1, single buffered']
    #allocation5 [shape = 's32[1]{0}', space=sflag, size = 0x4, scoped, tag = 'scoped memory for gated_mil_forward.1']
    %22 = vsyncpa [#allocation3], 0
    %23 = vsyncpa [#allocation5], 0
    // Predicated region
    $region2: #{gated_mil_forward.1} parent=1 // pred_check
      _
    $region3: #{gated_mil_forward.1} parent=1 // pred_check_branch
      %25 = sbr.rel (0) target = $region5
    $region4: #{gated_mil_forward.1} parent=1 // pred_region
      _
    $region5: #{gated_mil_forward.1} parent=1 // pred_fallthru
      _
    // Predicated region
    $region6: #{gated_mil_forward.1} parent=1 // pred_check
      _
    $region7: #{gated_mil_forward.1} parent=1 // pred_check_branch
      %27 = sbr.rel (0) target = $region9
    $region8: #{gated_mil_forward.1} parent=1 // pred_region
      _
    $region9: #{gated_mil_forward.1} parent=1 // pred_fallthru
      _
    // Predicated region
    $region10: #{gated_mil_forward.1} parent=1 // pred_check
      _
    $region11: #{gated_mil_forward.1} parent=1 // pred_check_branch
      %29 = sbr.rel (0) target = $region13
    $region12: #{gated_mil_forward.1} parent=1 // pred_region
      _
    $region13: #{gated_mil_forward.1} parent=1 // pred_fallthru
      _
    // Predicated region
    $region14: #{gated_mil_forward.1} parent=1 // pred_check
      _
    $region15: #{gated_mil_forward.1} parent=1 // pred_check_branch
      %31 = sbr.rel (0) target = $region17
    $region16: #{gated_mil_forward.1} parent=1 // pred_region
      _
    $region17: #{gated_mil_forward.1} parent=1 // pred_fallthru
      _
    // Predicated region
    $region18: #{gated_mil_forward.1} parent=1 // pred_check
      _
    $region19: #{gated_mil_forward.1} parent=1 // pred_check_branch
      %33 = sbr.rel (0) target = $region21
    $region20: #{gated_mil_forward.1} parent=1 // pred_region
      _
    $region21: #{gated_mil_forward.1} parent=1 // pred_fallthru
      _
    // Predicated region
    $region22: #{gated_mil_forward.1} parent=1 // pred_check
      _
    $region23: #{gated_mil_forward.1} parent=1 // pred_check_branch
      %35 = sbr.rel (0) target = $region25
    $region24: #{gated_mil_forward.1} parent=1 // pred_region
      _
    $region25: #{gated_mil_forward.1} parent=1 // pred_fallthru
      _
    // Predicated region
    $region26: #{gated_mil_forward.1} parent=1 // pred_check
      _
    $region27: #{gated_mil_forward.1} parent=1 // pred_check_branch
      %37 = sbr.rel (0) target = $region29
    $region28: #{gated_mil_forward.1} parent=1 // pred_region
      _
    $region29: #{gated_mil_forward.1} parent=1 // pred_fallthru
      _
    // Predicated region
    $region30: #{gated_mil_forward.1} parent=1 // pred_check
      _
    $region31: #{gated_mil_forward.1} parent=1 // pred_check_branch
      %39 = sbr.rel (0) target = $region33
    $region32: #{gated_mil_forward.1} parent=1 // pred_region
      _
    $region33: #{gated_mil_forward.1} parent=1 // pred_fallthru
      _
    // Predicated region
    $region34: #{gated_mil_forward.1} parent=1 // pred_check
      _
    $region35: #{gated_mil_forward.1} parent=1 // pred_check_branch
      %41 = sbr.rel (0) target = $region37
    $region36: #{gated_mil_forward.1} parent=1 // pred_region
      _
    $region37: #{gated_mil_forward.1} parent=1 // pred_fallthru
      _
    // Predicated region
    $region38: #{gated_mil_forward.1} parent=1 // pred_check
      _
    $region39: #{gated_mil_forward.1} parent=1 // pred_check_branch
      %43 = sbr.rel (0) target = $region41
    $region40: #{gated_mil_forward.1} parent=1 // pred_region
      _
    $region41: #{gated_mil_forward.1} parent=1 // pred_fallthru
      _
    // Predicated region
    $region42: #{gated_mil_forward.1} parent=1 // pred_check
      _
    $region43: #{gated_mil_forward.1} parent=1 // pred_check_branch
      %45 = sbr.rel (0) target = $region45
    $region44: #{gated_mil_forward.1} parent=1 // pred_region
      _
    $region45: #{gated_mil_forward.1} parent=1 // pred_fallthru
      _
    // Predicated region
    $region46: #{gated_mil_forward.1} parent=1 // pred_check
      _
    $region47: #{gated_mil_forward.1} parent=1 // pred_check_branch
      %47 = sbr.rel (0) target = $region49
    $region48: #{gated_mil_forward.1} parent=1 // pred_region
      _
    $region49: #{gated_mil_forward.1} parent=1 // pred_fallthru
      _
    // Predicated region
    $region50: #{gated_mil_forward.1} parent=1 // pred_check
      _
    $region51: #{gated_mil_forward.1} parent=1 // pred_check_branch
      %49 = sbr.rel (0) target = $region53
    $region52: #{gated_mil_forward.1} parent=1 // pred_region
      _
    $region53: #{gated_mil_forward.1} parent=1 // pred_fallthru
      _
    // Predicated region
    $region54: #{gated_mil_forward.1} parent=1 // pred_check
      _
    $region55: #{gated_mil_forward.1} parent=1 // pred_check_branch
      %51 = sbr.rel (0) target = $region57
    $region56: #{gated_mil_forward.1} parent=1 // pred_region
      _
    $region57: #{gated_mil_forward.1} parent=1 // pred_fallthru
      _
    // Predicated region
    $region58: #{gated_mil_forward.1} parent=1 // pred_check
      _
    $region59: #{gated_mil_forward.1} parent=1 // pred_check_branch
      %53 = sbr.rel (0) target = $region61
    $region60: #{gated_mil_forward.1} parent=1 // pred_region
      _
    $region61: #{gated_mil_forward.1} parent=1 // pred_fallthru
      _
    %v55 = vld [vmem:[%s1] sm:$0xf]
    %v56 = vld [vmem:[%s1 + $0x4] sm:$0xf]
    %v57 = vld [vmem:[%s1 + $0x8] sm:$0xf]
    %v58 = vld [vmem:[%s1 + $0xc] sm:$0xf]
    %v59 = vld [vmem:[%s2] sm:$0xf]
    %v60 = vld [vmem:[%s2 + $0x4] sm:$0xf]
    %v61 = vld [vmem:[%s2 + $0x8] sm:$0xf]
    %v62 = vld [vmem:[%s2 + $0xc] sm:$0xf]
    %v63 = vld [vmem:[%s3] sm:$0x1]
    %v65 = vlaneseq
    %v66 = vshrl.u32 %v65, 7
    %v67 = vsub.s32 0, %v66
    %v68 = vrot.slane %v63, %v67
    %v74 = vunpack.c.l.b16 %v55
    %v75 = vunpack.c.l.b16 %v56
    %v76 = vunpack.c.l.b16 %v57
    %v77 = vunpack.c.l.b16 %v58
    %v78 = vpack.c.b16 %v75, %v74
    %v79 = vpack.c.b16 %v77, %v76
    %v84 = vunpack.c.l.b16 %v59
    %v85 = vunpack.c.l.b16 %v60
    %v86 = vunpack.c.l.b16 %v61
    %v87 = vunpack.c.l.b16 %v62
    %v88 = vpack.c.b16 %v85, %v84
    %v89 = vpack.c.b16 %v87, %v86
    %vm92 = vcmask 261120
    %v94 = vsel %vm92, %v78, 0
    %v97 = vsel %vm92, %v79, 0
    %99 = vmatprep.subr.bf16.mxu0 0
    %100 = vmatpush1.bf16.msra.mxu0 0
    %101 = vmatprep.subr.bf16.mxu0 0
    %102 = vmatpush1.bf16.msra.mxu0 0
    %103 = vmatprep.subr.bf16.mxu0 0
    %104 = vmatpush1.bf16.msra.mxu0 0
    %105 = vmatprep.subr.bf16.mxu0 0
    %106 = vmatpush1.bf16.msra.mxu0 0
    %107 = vmatprep.subr.bf16.mxu0 0
    %108 = vmatpush1.bf16.msra.mxu0 0
    %109 = vmatprep.subr.bf16.mxu0 0
    %110 = vmatpush1.bf16.msra.mxu0 0
    %111 = vmatprep.subr.bf16.mxu0 0
    %112 = vmatpush1.bf16.msra.mxu0 %v89
    %113 = vmatprep.subr.bf16.mxu0 0
    %114 = vmatpush1.bf16.msra.mxu0 %v88
    %115 = vmatprep.subr.bf16.mxu0 0
    %116 = vmatpush2.bf16.msra.mxu0 0
    %117 = vmatprep.subr.bf16.mxu0 0
    %118 = vmatpush2.bf16.msra.mxu0 0
    %119 = vmatprep.subr.bf16.mxu0 0
    %120 = vmatpush2.bf16.msra.mxu0 0
    %121 = vmatprep.subr.bf16.mxu0 0
    %122 = vmatpush2.bf16.msra.mxu0 0
    %123 = vmatprep.subr.bf16.mxu0 0
    %124 = vmatpush2.bf16.msra.mxu0 0
    %125 = vmatprep.subr.bf16.mxu0 0
    %126 = vmatpush2.bf16.msra.mxu0 0
    %127 = vmatprep.subr.bf16.mxu0 0
    %128 = vmatpush2.bf16.msra.mxu0 0
    %129 = vmatprep.subr.bf16.mxu0 0
    %130 = vmatpush2.bf16.msra.mxu0 0
    %131 = vmatprep.mubr.bf16.mxu0 0
    %132 = vmatmul.mubr.bf16.gmra.mxu0 %v94
    %v133 = vpop.f32.mrf.mxu0
    %v134 = vadd.f32 %v68, %v133
    %v135 = vpop.f32.mrf.mxu0
    %v136 = vpop.f32.mrf.mxu0
    %v137 = vadd.f32 %v68, %v136
    %v138 = vpop.f32.mrf.mxu0
    %139 = vmatprep.mubr.bf16.mxu0 0
    %140 = vmatmul.mubr.bf16.gmra.mxu0 %v97
    %v141 = vpop.f32.mrf.mxu0
    %v142 = vadd.f32 %v68, %v141
    %v143 = vpop.f32.mrf.mxu0
    %v144 = vpop.f32.mrf.mxu0
    %v145 = vadd.f32 %v68, %v144
    %v146 = vpop.f32.mrf.mxu0
    %147 = vdwg.mxu0
    %vm148 = vcmp.gt.f32.partialorder %v134, 0.0
    %vm149 = vcmp.gt.f32.partialorder %v137, 0.0
    %vm150 = vcmp.gt.f32.partialorder %v142, 0.0
    %vm151 = vcmp.gt.f32.partialorder %v145, 0.0
    %v152 = vmul.f32 %v134, 1.442695
    %v153 = vpow.pop %v152
    %v154 = vmul.f32 %v137, 1.442695
    %v155 = vpow.pop %v154
    %v156 = vmul.f32 %v142, 1.442695
    %v157 = vpow.pop %v156
    %v158 = vmul.f32 %v145, 1.442695
    %v159 = vpow.pop %v158
    %v160 = vsub.f32 %v153, 1.0
    %v161 = vsub.f32 %v155, 1.0
    %v162 = vsub.f32 %v157, 1.0
    %v163 = vsub.f32 %v159, 1.0
    %v164 = vsel %vm148, %v134, %v160
    %v165 = vsel %vm149, %v137, %v161
    %v166 = vsel %vm150, %v142, %v162
    %v167 = vsel %vm151, %v145, %v163
    %v168 = vpack.c.bf16 %v165, %v164
    %v169 = vpack.c.bf16 %v167, %v166
    %v170 = vld [vmem:[%s4] sm:$0xff]
    %v171 = vld [vmem:[%s4 + $0x8] sm:$0xf]
    %v172 = vld [vmem:[%s4 + $0xc] sm:$0xff]
    %v173 = vld [vmem:[%s4 + $0x14] sm:$0xf]
    %v174 = vld [vmem:[%s4 + $0x18] sm:$0xff]
    %v175 = vld [vmem:[%s4 + $0x20] sm:$0xf]
    %v176 = vld [vmem:[%s4 + $0x24] sm:$0xff]
    %v177 = vld [vmem:[%s4 + $0x2c] sm:$0xf]
    %v178 = vld [vmem:[%s4 + $0x30] sm:$0xff]
    %v179 = vld [vmem:[%s4 + $0x38] sm:$0xf]
    %v180 = vld [vmem:[%s4 + $0x3c] sm:$0xff]
    %v181 = vld [vmem:[%s4 + $0x44] sm:$0xf]
    %v182 = vld [vmem:[%s4 + $0x48] sm:$0xff]
    %v183 = vld [vmem:[%s4 + $0x50] sm:$0xf]
    %v184 = vld [vmem:[%s4 + $0x54] sm:$0xff]
    %v185 = vld [vmem:[%s4 + $0x5c] sm:$0xf]
    %v186 = vld [vmem:[%s4 + $0x60] sm:$0xff]
    %v187 = vld [vmem:[%s4 + $0x68] sm:$0xf]
    %v188 = vld [vmem:[%s4 + $0x6c] sm:$0xff]
    %v189 = vld [vmem:[%s4 + $0x74] sm:$0xf]
    %v190 = vld [vmem:[%s4 + $0x78] sm:$0xff]
    %v191 = vld [vmem:[%s4 + $0x80] sm:$0xf]
    %v192 = vld [vmem:[%s4 + $0x84] sm:$0xff]
    %v193 = vld [vmem:[%s4 + $0x8c] sm:$0xf]
    %v194 = vld [vmem:[%s4 + $0x90] sm:$0xff]
    %v195 = vld [vmem:[%s4 + $0x98] sm:$0xf]
    %v196 = vld [vmem:[%s4 + $0x9c] sm:$0xff]
    %v197 = vld [vmem:[%s4 + $0xa4] sm:$0xf]
    %v198 = vld [vmem:[%s4 + $0xa8] sm:$0xff]
    %v199 = vld [vmem:[%s4 + $0xb0] sm:$0xf]
    %v200 = vld [vmem:[%s4 + $0xb4] sm:$0xff]
    %v201 = vld [vmem:[%s4 + $0xbc] sm:$0xf]
    %v202 = vld [vmem:[%s5] sm:$0x7]
    %v204 = vlaneseq
    %v205 = vshrl.u32 %v204, 7
    %v206 = vsub.s32 0, %v205
    %v207 = vrot.slane %v202, %v206
    %v208 = vlaneseq
    %v209 = vshrl.u32 %v208, 7
    %v210 = vsub.s32 1, %v209
    %v211 = vrot.slane %v202, %v210
    %v212 = vlaneseq
    %v213 = vshrl.u32 %v212, 7
    %v214 = vsub.s32 2, %v213
    %v215 = vrot.slane %v202, %v214
    %v251 = vunpack.c.l.b16 %v170
    %v252 = vunpack.c.h.b16 %v170
    %v253 = vunpack.c.l.b16 %v171
    %v254 = vunpack.c.l.b16 %v172
    %v255 = vunpack.c.h.b16 %v172
    %v256 = vunpack.c.l.b16 %v173
    %v257 = vunpack.c.l.b16 %v174
    %v258 = vunpack.c.h.b16 %v174
    %v259 = vunpack.c.l.b16 %v175
    %v260 = vunpack.c.l.b16 %v176
    %v261 = vunpack.c.h.b16 %v176
    %v262 = vunpack.c.l.b16 %v177
    %v263 = vunpack.c.l.b16 %v178
    %v264 = vunpack.c.h.b16 %v178
    %v265 = vunpack.c.l.b16 %v179
    %v266 = vunpack.c.l.b16 %v180
    %v267 = vunpack.c.h.b16 %v180
    %v268 = vunpack.c.l.b16 %v181
    %v269 = vunpack.c.l.b16 %v182
    %v270 = vunpack.c.h.b16 %v182
    %v271 = vunpack.c.l.b16 %v183
    %v272 = vunpack.c.l.b16 %v184
    %v273 = vunpack.c.h.b16 %v184
    %v274 = vunpack.c.l.b16 %v185
    %v275 = vunpack.c.l.b16 %v186
    %v276 = vunpack.c.h.b16 %v186
    %v277 = vunpack.c.l.b16 %v187
    %v278 = vunpack.c.l.b16 %v188
    %v279 = vunpack.c.h.b16 %v188
    %v280 = vunpack.c.l.b16 %v189
    %v281 = vunpack.c.l.b16 %v190
    %v282 = vunpack.c.h.b16 %v190
    %v283 = vunpack.c.l.b16 %v191
    %v284 = vunpack.c.l.b16 %v192
    %v285 = vunpack.c.h.b16 %v192
    %v286 = vunpack.c.l.b16 %v193
    %v287 = vunpack.c.l.b16 %v194
    %v288 = vunpack.c.h.b16 %v194
    %v289 = vunpack.c.l.b16 %v195
    %v290 = vunpack.c.l.b16 %v196
    %v291 = vunpack.c.h.b16 %v196
    %v292 = vunpack.c.l.b16 %v197
    %v293 = vunpack.c.l.b16 %v198
    %v294 = vunpack.c.h.b16 %v198
    %v295 = vunpack.c.l.b16 %v199
    %v296 = vunpack.c.l.b16 %v200
    %v297 = vunpack.c.h.b16 %v200
    %v298 = vunpack.c.l.b16 %v201
    %v299 = vpack.c.b16 %v254, %v251
    %v300 = vpack.c.b16 %v255, %v252
    %v301 = vpack.c.b16 %v256, %v253
    %v302 = vpack.c.b16 %v260, %v257
    %v303 = vpack.c.b16 %v261, %v258
    %v304 = vpack.c.b16 %v262, %v259
    %v305 = vpack.c.b16 %v266, %v263
    %v306 = vpack.c.b16 %v267, %v264
    %v307 = vpack.c.b16 %v268, %v265
    %v308 = vpack.c.b16 %v272, %v269
    %v309 = vpack.c.b16 %v273, %v270
    %v310 = vpack.c.b16 %v274, %v271
    %v311 = vpack.c.b16 %v278, %v275
    %v312 = vpack.c.b16 %v279, %v276
    %v313 = vpack.c.b16 %v280, %v277
    %v314 = vpack.c.b16 %v284, %v281
    %v315 = vpack.c.b16 %v285, %v282
    %v316 = vpack.c.b16 %v286, %v283
    %v317 = vpack.c.b16 %v290, %v287
    %v318 = vpack.c.b16 %v291, %v288
    %v319 = vpack.c.b16 %v292, %v289
    %v320 = vpack.c.b16 %v296, %v293
    %v321 = vpack.c.b16 %v297, %v294
    %v322 = vpack.c.b16 %v298, %v295
    %347 = vmatprep.subr.bf16.mxu0 %v321
    %348 = vmatpush1.bf16.msra.mxu0 %v320
    %349 = vmatprep.subr.bf16.mxu0 %v318
    %350 = vmatpush1.bf16.msra.mxu0 %v317
    %351 = vmatprep.subr.bf16.mxu0 %v315
    %352 = vmatpush1.bf16.msra.mxu0 %v314
    %353 = vmatprep.subr.bf16.mxu0 %v312
    %354 = vmatpush1.bf16.msra.mxu0 %v311
    %355 = vmatprep.subr.bf16.mxu0 %v309
    %356 = vmatpush1.bf16.msra.mxu0 %v308
    %357 = vmatprep.subr.bf16.mxu0 %v306
    %358 = vmatpush1.bf16.msra.mxu0 %v305
    %359 = vmatprep.subr.bf16.mxu0 %v303
    %360 = vmatpush1.bf16.msra.mxu0 %v302
    %361 = vmatprep.subr.bf16.mxu0 %v300
    %362 = vmatpush1.bf16.msra.mxu0 %v299
    %363 = vmatprep.subr.bf16.mxu0 0
    %364 = vmatpush2.bf16.msra.mxu0 0
    %365 = vmatprep.subr.bf16.mxu0 0
    %366 = vmatpush2.bf16.msra.mxu0 0
    %367 = vmatprep.subr.bf16.mxu0 0
    %368 = vmatpush2.bf16.msra.mxu0 0
    %369 = vmatprep.subr.bf16.mxu0 0
    %370 = vmatpush2.bf16.msra.mxu0 0
    %371 = vmatprep.subr.bf16.mxu0 0
    %372 = vmatpush2.bf16.msra.mxu0 0
    %373 = vmatprep.subr.bf16.mxu0 0
    %374 = vmatpush2.bf16.msra.mxu0 0
    %375 = vmatprep.subr.bf16.mxu0 0
    %376 = vmatpush2.bf16.msra.mxu0 0
    %377 = vmatprep.subr.bf16.mxu0 0
    %378 = vmatpush2.bf16.msra.mxu0 0
    %379 = vmatprep.mubr.bf16.mxu0 0
    %380 = vmatmul.mubr.bf16.gmra.mxu0 %v168
    %v381 = vpop.f32.mrf.mxu0
    %v382 = vadd.f32 %v207, %v381
    %v383 = vpop.f32.mrf.mxu0
    %v384 = vadd.f32 %v211, %v383
    %v385 = vpop.f32.mrf.mxu0
    %v386 = vadd.f32 %v207, %v385
    %v387 = vpop.f32.mrf.mxu0
    %v388 = vadd.f32 %v211, %v387
    %389 = vmatprep.mubr.bf16.mxu0 0
    %390 = vmatmul.mubr.bf16.gmra.mxu0 %v169
    %v391 = vpop.f32.mrf.mxu0
    %v392 = vadd.f32 %v207, %v391
    %v393 = vpop.f32.mrf.mxu0
    %v394 = vadd.f32 %v211, %v393
    %v395 = vpop.f32.mrf.mxu0
    %v396 = vadd.f32 %v207, %v395
    %v397 = vpop.f32.mrf.mxu0
    %v398 = vadd.f32 %v211, %v397
    %399 = vdwg.mxu0
    %400 = vmatprep.subr.bf16.mxu0 0
    %401 = vmatpush1.bf16.msra.mxu0 %v322
    %402 = vmatprep.subr.bf16.mxu0 0
    %403 = vmatpush1.bf16.msra.mxu0 %v319
    %404 = vmatprep.subr.bf16.mxu0 0
    %405 = vmatpush1.bf16.msra.mxu0 %v316
    %406 = vmatprep.subr.bf16.mxu0 0
    %407 = vmatpush1.bf16.msra.mxu0 %v313
    %408 = vmatprep.subr.bf16.mxu0 0
    %409 = vmatpush1.bf16.msra.mxu0 %v310
    %410 = vmatprep.subr.bf16.mxu0 0
    %411 = vmatpush1.bf16.msra.mxu0 %v307
    %412 = vmatprep.subr.bf16.mxu0 0
    %413 = vmatpush1.bf16.msra.mxu0 %v304
    %414 = vmatprep.subr.bf16.mxu0 0
    %415 = vmatpush1.bf16.msra.mxu0 %v301
    %416 = vmatprep.subr.bf16.mxu0 0
    %417 = vmatpush2.bf16.msra.mxu0 0
    %418 = vmatprep.subr.bf16.mxu0 0
    %419 = vmatpush2.bf16.msra.mxu0 0
    %420 = vmatprep.subr.bf16.mxu0 0
    %421 = vmatpush2.bf16.msra.mxu0 0
    %422 = vmatprep.subr.bf16.mxu0 0
    %423 = vmatpush2.bf16.msra.mxu0 0
    %424 = vmatprep.subr.bf16.mxu0 0
    %425 = vmatpush2.bf16.msra.mxu0 0
    %426 = vmatprep.subr.bf16.mxu0 0
    %427 = vmatpush2.bf16.msra.mxu0 0
    %428 = vmatprep.subr.bf16.mxu0 0
    %429 = vmatpush2.bf16.msra.mxu0 0
    %430 = vmatprep.subr.bf16.mxu0 0
    %431 = vmatpush2.bf16.msra.mxu0 0
    %432 = vmatprep.mubr.bf16.mxu0 0
    %433 = vmatmul.mubr.bf16.gmra.mxu0 %v168
    %v434 = vpop.f32.mrf.mxu0
    %v435 = vadd.f32 %v215, %v434
    %v436 = vpop.f32.mrf.mxu0
    %v437 = vpop.f32.mrf.mxu0
    %v438 = vadd.f32 %v215, %v437
    %v439 = vpop.f32.mrf.mxu0
    %440 = vmatprep.mubr.bf16.mxu0 0
    %441 = vmatmul.mubr.bf16.gmra.mxu0 %v169
    %v442 = vpop.f32.mrf.mxu0
    %v443 = vadd.f32 %v215, %v442
    %v444 = vpop.f32.mrf.mxu0
    %v445 = vpop.f32.mrf.mxu0
    %v446 = vadd.f32 %v215, %v445
    %v447 = vpop.f32.mrf.mxu0
    %448 = vdwg.mxu0
    %v449 = vtanh.pop %v382
    %v450 = vtanh.pop %v386
    %v451 = vtanh.pop %v392
    %v452 = vtanh.pop %v396
    %v453 = vxor.u32 %v384, 2147483648
    %v454 = vxor.u32 %v388, 2147483648
    %v455 = vxor.u32 %v394, 2147483648
    %v456 = vxor.u32 %v398, 2147483648
    %v457 = vmul.f32 %v453, 1.442695
    %v458 = vpow.pop %v457
    %v459 = vmul.f32 %v454, 1.442695
    %v460 = vpow.pop %v459
    %v461 = vmul.f32 %v455, 1.442695
    %v462 = vpow.pop %v461
    %v463 = vmul.f32 %v456, 1.442695
    %v464 = vpow.pop %v463
    %v465 = vadd.f32 %v458, 1.0
    %v466 = vadd.f32 %v460, 1.0
    %v467 = vadd.f32 %v462, 1.0
    %v468 = vadd.f32 %v464, 1.0
    %v469 = vrcp.pop %v465
    %v470 = vmul.f32 1.0, %v469
    %v471 = vrcp.pop %v466
    %v472 = vmul.f32 1.0, %v471
    %v473 = vrcp.pop %v467
    %v474 = vmul.f32 1.0, %v473
    %v475 = vrcp.pop %v468
    %v476 = vmul.f32 1.0, %v475
    %v477 = vmul.f32 %v449, %v470
    %v478 = vmul.f32 %v450, %v472
    %v479 = vmul.f32 %v451, %v474
    %v480 = vmul.f32 %v452, %v476
    %v481 = vpack.c.bf16 %v478, %v477
    %v482 = vpack.c.bf16 %v480, %v479
    %v483 = vld [vmem:[%s6] sm:$0xf]
    %v484 = vld [vmem:[%s6 + $0x4] sm:$0xf]
    %v485 = vld [vmem:[%s6 + $0x8] sm:$0xf]
    %v486 = vld [vmem:[%s6 + $0xc] sm:$0xf]
    %v487 = vld [vmem:[%s6 + $0x10] sm:$0xf]
    %v488 = vld [vmem:[%s6 + $0x14] sm:$0xf]
    %v489 = vld [vmem:[%s6 + $0x18] sm:$0xf]
    %v490 = vld [vmem:[%s6 + $0x1c] sm:$0xf]
    %v491 = vld [vmem:[%s6 + $0x20] sm:$0xf]
    %v492 = vld [vmem:[%s6 + $0x24] sm:$0xf]
    %v493 = vld [vmem:[%s6 + $0x28] sm:$0xf]
    %v494 = vld [vmem:[%s6 + $0x2c] sm:$0xf]
    %v495 = vld [vmem:[%s6 + $0x30] sm:$0xf]
    %v496 = vld [vmem:[%s6 + $0x34] sm:$0xf]
    %v497 = vld [vmem:[%s6 + $0x38] sm:$0xf]
    %v498 = vld [vmem:[%s6 + $0x3c] sm:$0xf]
    %v499 = vld [vmem:[%s7] sm:$0x1]
    %v501 = vlaneseq
    %v502 = vshrl.u32 %v501, 7
    %v503 = vsub.s32 0, %v502
    %v504 = vrot.slane %v499, %v503
    %v522 = vunpack.c.l.b16 %v483
    %v523 = vunpack.c.l.b16 %v484
    %v524 = vunpack.c.l.b16 %v485
    %v525 = vunpack.c.l.b16 %v486
    %v526 = vunpack.c.l.b16 %v487
    %v527 = vunpack.c.l.b16 %v488
    %v528 = vunpack.c.l.b16 %v489
    %v529 = vunpack.c.l.b16 %v490
    %v530 = vunpack.c.l.b16 %v491
    %v531 = vunpack.c.l.b16 %v492
    %v532 = vunpack.c.l.b16 %v493
    %v533 = vunpack.c.l.b16 %v494
    %v534 = vunpack.c.l.b16 %v495
    %v535 = vunpack.c.l.b16 %v496
    %v536 = vunpack.c.l.b16 %v497
    %v537 = vunpack.c.l.b16 %v498
    %v538 = vpack.c.b16 %v523, %v522
    %v539 = vpack.c.b16 %v525, %v524
    %v540 = vpack.c.b16 %v527, %v526
    %v541 = vpack.c.b16 %v529, %v528
    %v542 = vpack.c.b16 %v531, %v530
    %v543 = vpack.c.b16 %v533, %v532
    %v544 = vpack.c.b16 %v535, %v534
    %v545 = vpack.c.b16 %v537, %v536
    %554 = vmatprep.subr.bf16.mxu0 0
    %555 = vmatpush1.bf16.msra.mxu0 %v545
    %556 = vmatprep.subr.bf16.mxu0 0
    %557 = vmatpush1.bf16.msra.mxu0 %v544
    %558 = vmatprep.subr.bf16.mxu0 0
    %559 = vmatpush1.bf16.msra.mxu0 %v543
    %560 = vmatprep.subr.bf16.mxu0 0
    %561 = vmatpush1.bf16.msra.mxu0 %v542
    %562 = vmatprep.subr.bf16.mxu0 0
    %563 = vmatpush1.bf16.msra.mxu0 %v541
    %564 = vmatprep.subr.bf16.mxu0 0
    %565 = vmatpush1.bf16.msra.mxu0 %v540
    %566 = vmatprep.subr.bf16.mxu0 0
    %567 = vmatpush1.bf16.msra.mxu0 %v539
    %568 = vmatprep.subr.bf16.mxu0 0
    %569 = vmatpush1.bf16.msra.mxu0 %v538
    %570 = vmatprep.subr.bf16.mxu0 0
    %571 = vmatpush2.bf16.msra.mxu0 0
    %572 = vmatprep.subr.bf16.mxu0 0
    %573 = vmatpush2.bf16.msra.mxu0 0
    %574 = vmatprep.subr.bf16.mxu0 0
    %575 = vmatpush2.bf16.msra.mxu0 0
    %576 = vmatprep.subr.bf16.mxu0 0
    %577 = vmatpush2.bf16.msra.mxu0 0
    %578 = vmatprep.subr.bf16.mxu0 0
    %579 = vmatpush2.bf16.msra.mxu0 0
    %580 = vmatprep.subr.bf16.mxu0 0
    %581 = vmatpush2.bf16.msra.mxu0 0
    %582 = vmatprep.subr.bf16.mxu0 0
    %583 = vmatpush2.bf16.msra.mxu0 0
    %584 = vmatprep.subr.bf16.mxu0 0
    %585 = vmatpush2.bf16.msra.mxu0 0
    %586 = vmatprep.mubr.bf16.mxu0 0
    %587 = vmatmul.mubr.bf16.gmra.mxu0 %v481
    %v588 = vpop.f32.mrf.mxu0
    %v589 = vadd.f32 %v504, %v588
    %v590 = vpop.f32.mrf.mxu0
    %v591 = vpop.f32.mrf.mxu0
    %v592 = vadd.f32 %v504, %v591
    %v593 = vpop.f32.mrf.mxu0
    %594 = vmatprep.mubr.bf16.mxu0 0
    %595 = vmatmul.mubr.bf16.gmra.mxu0 %v482
    %v596 = vpop.f32.mrf.mxu0
    %v597 = vadd.f32 %v504, %v596
    %v598 = vpop.f32.mrf.mxu0
    %v599 = vpop.f32.mrf.mxu0
    %v600 = vadd.f32 %v504, %v599
    %v601 = vpop.f32.mrf.mxu0
    %602 = vdwg.mxu0
    %vm603 = vcmp.gt.f32.partialorder %v589, 0.0
    %vm604 = vcmp.gt.f32.partialorder %v592, 0.0
    %vm605 = vcmp.gt.f32.partialorder %v597, 0.0
    %vm606 = vcmp.gt.f32.partialorder %v600, 0.0
    %v607 = vmul.f32 %v589, 1.442695
    %v608 = vpow.pop %v607
    %v609 = vmul.f32 %v592, 1.442695
    %v610 = vpow.pop %v609
    %v611 = vmul.f32 %v597, 1.442695
    %v612 = vpow.pop %v611
    %v613 = vmul.f32 %v600, 1.442695
    %v614 = vpow.pop %v613
    %v615 = vsub.f32 %v608, 1.0
    %v616 = vsub.f32 %v610, 1.0
    %v617 = vsub.f32 %v612, 1.0
    %v618 = vsub.f32 %v614, 1.0
    %v619 = vsel %vm603, %v589, %v615
    %v620 = vsel %vm604, %v592, %v616
    %v621 = vsel %vm605, %v597, %v617
    %v622 = vsel %vm606, %v600, %v618
    %v623 = vld [vmem:[%s8] sm:$0x1]
    %v625 = vlaneseq
    %v626 = vshrl.u32 %v625, 7
    %v627 = vsub.s32 0, %v626
    %v628 = vrot.slane %v623, %v627
    %v630 = vmul.f32 %v619, %v628
    %v631 = vmul.f32 %v620, %v628
    %v632 = vmul.f32 %v621, %v628
    %v633 = vmul.f32 %v622, %v628
    %634 = vadd.xlane.f32.xlu0 %v630
    %v635 = vpop.xlane.xlu0 %634
    %636 = vadd.xlane.f32.xlu0 %v631
    %v637 = vpop.xlane.xlu0 %636
    %638 = vadd.xlane.f32.xlu0 %v632
    %v639 = vpop.xlane.xlu0 %638
    %640 = vadd.xlane.f32.xlu0 %v633
    %v641 = vpop.xlane.xlu0 %640
    %v642 = vlaneseq
    %v643 = vand.u32 %v642, 127
    %v644 = vld [vmem:[%s0] sm:$0x3]
    %645 = vset.pattern.permute.xlu0 0
    %646 = vperm.xlu0 %645, %v644
    %v647 = vpop.permute.xlu0 %646
    %vm648 = vcmp.lt.s32.totalorder %v643, %v647
    %v653 = vlaneseq
    %v654 = vshrl.u32 %v653, 7
    %v655 = vsub.s32 %v643, %v654
    %v656 = vrot.slane %v635, %v655
    %v657 = vadd.s32 %v643, 4294967288
    %v658 = vlaneseq
    %v659 = vshrl.u32 %v658, 7
    %v660 = vsub.s32 %v657, %v659
    %v661 = vrot.slane %v637, %v660
    %vm662 = vcmask 130112
    %v663 = vsel %vm662, %v661, %v656
    %v664 = vlaneseq
    %v665 = vshrl.u32 %v664, 7
    %v666 = vsub.s32 %v643, %v665
    %v667 = vrot.slane %v639, %v666
    %v668 = vlaneseq
    %v669 = vshrl.u32 %v668, 7
    %v670 = vsub.s32 %v657, %v669
    %v671 = vrot.slane %v641, %v670
    %v672 = vsel %vm662, %v671, %v667
    %vm673 = vcmask 1041409
    %v674 = vsel %vm673, %v672, %v663
    %v676 = vsel %vm648, %v674, -inf
    %vm677 = vcmask 123904
    %v678 = vsel %vm677, %v676, -inf
    %679 = vmax.xlane.f32.xlu0 %v678
    %v680 = vpop.xlane.xlu0 %679
    %v681 = vsub.f32 %v676, %v680
    %v682 = vmul.f32 %v681, 1.442695
    %v683 = vpow.pop %v682
    %v684 = vsel %vm677, %v683, 0.0
    %685 = vadd.xlane.f32.xlu0 %v684
    %v686 = vpop.xlane.xlu0 %685
    %v687 = vrcp.pop %v686
    %v688 = vmul.f32 %v683, %v687
    %689 = vst.msk [vmem:[#allocation2] sm:$0x3] %vm677, %v688
    %v690 = vlaneseq
    %v691 = vshrl.u32 %v690, 7
    %v692 = vsub.s32 0, %v691
    %v693 = vrot.slane %v688, %v692
    %695 = vbcast.lane.b32.xlu0 %v693, 256
    %v696 = vpop.permute.xlu0 %695
    %s698 = sor.u32 256, 8
    %699 = vbcast.lane.b32.xlu0 %v693, %s698
    %v700 = vpop.permute.xlu0 %699
    %v701 = vlaneseq
    %v702 = vshrl.u32 %v701, 7
    %v703 = vsub.s32 1, %v702
    %v704 = vrot.slane %v688, %v703
    %706 = vbcast.lane.b32.xlu0 %v704, 256
    %v707 = vpop.permute.xlu0 %706
    %s709 = sor.u32 256, 8
    %710 = vbcast.lane.b32.xlu0 %v704, %s709
    %v711 = vpop.permute.xlu0 %710
    %v712 = vmul.f32 %v696, %v435
    %v713 = vmul.f32 %v700, %v438
    %v714 = vmul.f32 %v707, %v443
    %v715 = vmul.f32 %v711, %v446
    %v716 = vadd.f32 %v712, %v713
    %v717 = vrot.slane %v716, 4
    %v718 = vadd.f32 %v716, %v717
    %v719 = vrot.slane %v718, 2
    %v720 = vadd.f32 %v718, %v719
    %v721 = vrot.slane %v720, 1
    %v722 = vadd.f32 %v720, %v721
    %v723 = vadd.f32 %v714, %v715
    %v724 = vrot.slane %v723, 4
    %v725 = vadd.f32 %v723, %v724
    %v726 = vrot.slane %v725, 2
    %v727 = vadd.f32 %v725, %v726
    %v728 = vrot.slane %v727, 1
    %v729 = vadd.f32 %v727, %v728
    %v730 = vpack.c.bf16 %v722, %v722
    %v731 = vpack.c.bf16 %v729, %v729
    %v732 = vld [vmem:[%s9] sm:$0xf]
    %v733 = vld [vmem:[%s9 + $0x4] sm:$0xf]
    %v734 = vld [vmem:[%s9 + $0x8] sm:$0xf]
    %v735 = vld [vmem:[%s9 + $0xc] sm:$0xf]
    %v736 = vld [vmem:[%s9 + $0x10] sm:$0xf]
    %v737 = vld [vmem:[%s9 + $0x14] sm:$0xf]
    %v738 = vld [vmem:[%s9 + $0x18] sm:$0xf]
    %v739 = vld [vmem:[%s9 + $0x1c] sm:$0xf]
    %v740 = vld [vmem:[%s9 + $0x20] sm:$0xf]
    %v741 = vld [vmem:[%s9 + $0x24] sm:$0xf]
    %v742 = vld [vmem:[%s9 + $0x28] sm:$0xf]
    %v743 = vld [vmem:[%s9 + $0x2c] sm:$0xf]
    %v744 = vld [vmem:[%s9 + $0x30] sm:$0xf]
    %v745 = vld [vmem:[%s9 + $0x34] sm:$0xf]
    %v746 = vld [vmem:[%s9 + $0x38] sm:$0xf]
    %v747 = vld [vmem:[%s9 + $0x3c] sm:$0xf]
    %v748 = vld [vmem:[%s10] sm:$0x1]
    %v750 = vlaneseq
    %v751 = vshrl.u32 %v750, 7
    %v752 = vsub.s32 0, %v751
    %v753 = vrot.slane %v748, %v752
    %v757 = vunpack.c.l.b16 %v730
    %v758 = vunpack.c.l.b16 %v731
    %v759 = vsel %vm673, %v758, %v757
    %v760 = vpack.c.b16 %v759, %v759
    %v778 = vunpack.c.l.b16 %v732
    %v779 = vunpack.c.l.b16 %v733
    %v780 = vunpack.c.l.b16 %v734
    %v781 = vunpack.c.l.b16 %v735
    %v782 = vunpack.c.l.b16 %v736
    %v783 = vunpack.c.l.b16 %v737
    %v784 = vunpack.c.l.b16 %v738
    %v785 = vunpack.c.l.b16 %v739
    %v786 = vunpack.c.l.b16 %v740
    %v787 = vunpack.c.l.b16 %v741
    %v788 = vunpack.c.l.b16 %v742
    %v789 = vunpack.c.l.b16 %v743
    %v790 = vunpack.c.l.b16 %v744
    %v791 = vunpack.c.l.b16 %v745
    %v792 = vunpack.c.l.b16 %v746
    %v793 = vunpack.c.l.b16 %v747
    %v794 = vpack.c.b16 %v779, %v778
    %v795 = vpack.c.b16 %v781, %v780
    %v796 = vpack.c.b16 %v783, %v782
    %v797 = vpack.c.b16 %v785, %v784
    %v798 = vpack.c.b16 %v787, %v786
    %v799 = vpack.c.b16 %v789, %v788
    %v800 = vpack.c.b16 %v791, %v790
    %v801 = vpack.c.b16 %v793, %v792
    %810 = vmatprep.subr.bf16.mxu0 0
    %811 = vmatpush1.bf16.msra.mxu0 %v801
    %812 = vmatprep.subr.bf16.mxu0 0
    %813 = vmatpush1.bf16.msra.mxu0 %v800
    %814 = vmatprep.subr.bf16.mxu0 0
    %815 = vmatpush1.bf16.msra.mxu0 %v799
    %816 = vmatprep.subr.bf16.mxu0 0
    %817 = vmatpush1.bf16.msra.mxu0 %v798
    %818 = vmatprep.subr.bf16.mxu0 0
    %819 = vmatpush1.bf16.msra.mxu0 %v797
    %820 = vmatprep.subr.bf16.mxu0 0
    %821 = vmatpush1.bf16.msra.mxu0 %v796
    %822 = vmatprep.subr.bf16.mxu0 0
    %823 = vmatpush1.bf16.msra.mxu0 %v795
    %824 = vmatprep.subr.bf16.mxu0 0
    %825 = vmatpush1.bf16.msra.mxu0 %v794
    %826 = vmatprep.subr.bf16.mxu0 0
    %827 = vmatpush2.bf16.msra.mxu0 0
    %828 = vmatprep.subr.bf16.mxu0 0
    %829 = vmatpush2.bf16.msra.mxu0 0
    %830 = vmatprep.subr.bf16.mxu0 0
    %831 = vmatpush2.bf16.msra.mxu0 0
    %832 = vmatprep.subr.bf16.mxu0 0
    %833 = vmatpush2.bf16.msra.mxu0 0
    %834 = vmatprep.subr.bf16.mxu0 0
    %835 = vmatpush2.bf16.msra.mxu0 0
    %836 = vmatprep.subr.bf16.mxu0 0
    %837 = vmatpush2.bf16.msra.mxu0 0
    %838 = vmatprep.subr.bf16.mxu0 0
    %839 = vmatpush2.bf16.msra.mxu0 0
    %840 = vmatprep.subr.bf16.mxu0 0
    %841 = vmatpush2.bf16.msra.mxu0 0
    %842 = vmatprep.mubr.bf16.mxu0 0
    %843 = vmatmul.mubr.bf16.gmra.mxu0 %v760
    %v844 = vpop.f32.mrf.mxu0
    %v845 = vadd.f32 %v753, %v844
    %v846 = vpop.f32.mrf.mxu0
    %v847 = vpop.f32.mrf.mxu0
    %v848 = vpop.f32.mrf.mxu0
    %849 = vdwg.mxu0
    %vm850 = vcmp.gt.f32.partialorder %v845, 0.0
    %v851 = vmul.f32 %v845, 1.442695
    %v852 = vpow.pop %v851
    %v853 = vsub.f32 %v852, 1.0
    %v854 = vsel %vm850, %v845, %v853
    %v855 = vpack.c.bf16 %v854, %v854
    %v856 = vld [vmem:[%s11] sm:$0xf]
    %v857 = vld [vmem:[%s11 + $0x4] sm:$0xf]
    %v858 = vld [vmem:[%s11 + $0x8] sm:$0xf]
    %v859 = vld [vmem:[%s11 + $0xc] sm:$0xf]
    %v860 = vld [vmem:[%s11 + $0x10] sm:$0xf]
    %v861 = vld [vmem:[%s11 + $0x14] sm:$0xf]
    %v862 = vld [vmem:[%s11 + $0x18] sm:$0xf]
    %v863 = vld [vmem:[%s11 + $0x1c] sm:$0xf]
    %v864 = vld [vmem:[%s11 + $0x20] sm:$0xf]
    %v865 = vld [vmem:[%s11 + $0x24] sm:$0xf]
    %v866 = vld [vmem:[%s11 + $0x28] sm:$0xf]
    %v867 = vld [vmem:[%s11 + $0x2c] sm:$0xf]
    %v868 = vld [vmem:[%s11 + $0x30] sm:$0xf]
    %v869 = vld [vmem:[%s11 + $0x34] sm:$0xf]
    %v870 = vld [vmem:[%s11 + $0x38] sm:$0xf]
    %v871 = vld [vmem:[%s11 + $0x3c] sm:$0xf]
    %v872 = vld [vmem:[%s12] sm:$0x1]
    %v874 = vlaneseq
    %v875 = vshrl.u32 %v874, 7
    %v876 = vsub.s32 0, %v875
    %v877 = vrot.slane %v872, %v876
    %v895 = vunpack.c.l.b16 %v856
    %v896 = vunpack.c.l.b16 %v857
    %v897 = vunpack.c.l.b16 %v858
    %v898 = vunpack.c.l.b16 %v859
    %v899 = vunpack.c.l.b16 %v860
    %v900 = vunpack.c.l.b16 %v861
    %v901 = vunpack.c.l.b16 %v862
    %v902 = vunpack.c.l.b16 %v863
    %v903 = vunpack.c.l.b16 %v864
    %v904 = vunpack.c.l.b16 %v865
    %v905 = vunpack.c.l.b16 %v866
    %v906 = vunpack.c.l.b16 %v867
    %v907 = vunpack.c.l.b16 %v868
    %v908 = vunpack.c.l.b16 %v869
    %v909 = vunpack.c.l.b16 %v870
    %v910 = vunpack.c.l.b16 %v871
    %v911 = vpack.c.b16 %v896, %v895
    %v912 = vpack.c.b16 %v898, %v897
    %v913 = vpack.c.b16 %v900, %v899
    %v914 = vpack.c.b16 %v902, %v901
    %v915 = vpack.c.b16 %v904, %v903
    %v916 = vpack.c.b16 %v906, %v905
    %v917 = vpack.c.b16 %v908, %v907
    %v918 = vpack.c.b16 %v910, %v909
    %927 = vmatprep.subr.bf16.mxu0 0
    %928 = vmatpush1.bf16.msra.mxu0 %v918
    %929 = vmatprep.subr.bf16.mxu0 0
    %930 = vmatpush1.bf16.msra.mxu0 %v917
    %931 = vmatprep.subr.bf16.mxu0 0
    %932 = vmatpush1.bf16.msra.mxu0 %v916
    %933 = vmatprep.subr.bf16.mxu0 0
    %934 = vmatpush1.bf16.msra.mxu0 %v915
    %935 = vmatprep.subr.bf16.mxu0 0
    %936 = vmatpush1.bf16.msra.mxu0 %v914
    %937 = vmatprep.subr.bf16.mxu0 0
    %938 = vmatpush1.bf16.msra.mxu0 %v913
    %939 = vmatprep.subr.bf16.mxu0 0
    %940 = vmatpush1.bf16.msra.mxu0 %v912
    %941 = vmatprep.subr.bf16.mxu0 0
    %942 = vmatpush1.bf16.msra.mxu0 %v911
    %943 = vmatprep.subr.bf16.mxu0 0
    %944 = vmatpush2.bf16.msra.mxu0 0
    %945 = vmatprep.subr.bf16.mxu0 0
    %946 = vmatpush2.bf16.msra.mxu0 0
    %947 = vmatprep.subr.bf16.mxu0 0
    %948 = vmatpush2.bf16.msra.mxu0 0
    %949 = vmatprep.subr.bf16.mxu0 0
    %950 = vmatpush2.bf16.msra.mxu0 0
    %951 = vmatprep.subr.bf16.mxu0 0
    %952 = vmatpush2.bf16.msra.mxu0 0
    %953 = vmatprep.subr.bf16.mxu0 0
    %954 = vmatpush2.bf16.msra.mxu0 0
    %955 = vmatprep.subr.bf16.mxu0 0
    %956 = vmatpush2.bf16.msra.mxu0 0
    %957 = vmatprep.subr.bf16.mxu0 0
    %958 = vmatpush2.bf16.msra.mxu0 0
    %959 = vmatprep.mubr.bf16.mxu0 0
    %960 = vmatmul.mubr.bf16.gmra.mxu0 %v855
    %v961 = vpop.f32.mrf.mxu0
    %v962 = vadd.f32 %v877, %v961
    %v963 = vpop.f32.mrf.mxu0
    %v964 = vpop.f32.mrf.mxu0
    %v965 = vpop.f32.mrf.mxu0
    %966 = vdwg.mxu0
    %vm967 = vcmp.gt.f32.partialorder %v962, 0.0
    %v968 = vmul.f32 %v962, 1.442695
    %v969 = vpow.pop %v968
    %v970 = vsub.f32 %v969, 1.0
    %v971 = vsel %vm967, %v962, %v970
    %v972 = vpack.c.bf16 %v971, %v971
    %v973 = vld [vmem:[%s13] sm:$0xf]
    %v974 = vld [vmem:[%s13 + $0x4] sm:$0xf]
    %v975 = vld [vmem:[%s13 + $0x8] sm:$0xf]
    %v976 = vld [vmem:[%s13 + $0xc] sm:$0xf]
    %v977 = vld [vmem:[%s13 + $0x10] sm:$0xf]
    %v978 = vld [vmem:[%s13 + $0x14] sm:$0xf]
    %v979 = vld [vmem:[%s13 + $0x18] sm:$0xf]
    %v980 = vld [vmem:[%s13 + $0x1c] sm:$0xf]
    %v981 = vld [vmem:[%s13 + $0x20] sm:$0xf]
    %v982 = vld [vmem:[%s13 + $0x24] sm:$0xf]
    %v983 = vld [vmem:[%s13 + $0x28] sm:$0xf]
    %v984 = vld [vmem:[%s13 + $0x2c] sm:$0xf]
    %v985 = vld [vmem:[%s13 + $0x30] sm:$0xf]
    %v986 = vld [vmem:[%s13 + $0x34] sm:$0xf]
    %v987 = vld [vmem:[%s13 + $0x38] sm:$0xf]
    %v988 = vld [vmem:[%s13 + $0x3c] sm:$0xf]
    %v989 = vld [vmem:[%s14] sm:$0x1]
    %v991 = vlaneseq
    %v992 = vshrl.u32 %v991, 7
    %v993 = vsub.s32 0, %v992
    %v994 = vrot.slane %v989, %v993
    %v1012 = vunpack.c.l.b16 %v973
    %v1013 = vunpack.c.l.b16 %v974
    %v1014 = vunpack.c.l.b16 %v975
    %v1015 = vunpack.c.l.b16 %v976
    %v1016 = vunpack.c.l.b16 %v977
    %v1017 = vunpack.c.l.b16 %v978
    %v1018 = vunpack.c.l.b16 %v979
    %v1019 = vunpack.c.l.b16 %v980
    %v1020 = vunpack.c.l.b16 %v981
    %v1021 = vunpack.c.l.b16 %v982
    %v1022 = vunpack.c.l.b16 %v983
    %v1023 = vunpack.c.l.b16 %v984
    %v1024 = vunpack.c.l.b16 %v985
    %v1025 = vunpack.c.l.b16 %v986
    %v1026 = vunpack.c.l.b16 %v987
    %v1027 = vunpack.c.l.b16 %v988
    %v1028 = vpack.c.b16 %v1013, %v1012
    %v1029 = vpack.c.b16 %v1015, %v1014
    %v1030 = vpack.c.b16 %v1017, %v1016
    %v1031 = vpack.c.b16 %v1019, %v1018
    %v1032 = vpack.c.b16 %v1021, %v1020
    %v1033 = vpack.c.b16 %v1023, %v1022
    %v1034 = vpack.c.b16 %v1025, %v1024
    %v1035 = vpack.c.b16 %v1027, %v1026
    %1044 = vmatprep.subr.bf16.mxu0 0
    %1045 = vmatpush1.bf16.msra.mxu0 %v1035
    %1046 = vmatprep.subr.bf16.mxu0 0
    %1047 = vmatpush1.bf16.msra.mxu0 %v1034
    %1048 = vmatprep.subr.bf16.mxu0 0
    %1049 = vmatpush1.bf16.msra.mxu0 %v1033
    %1050 = vmatprep.subr.bf16.mxu0 0
    %1051 = vmatpush1.bf16.msra.mxu0 %v1032
    %1052 = vmatprep.subr.bf16.mxu0 0
    %1053 = vmatpush1.bf16.msra.mxu0 %v1031
    %1054 = vmatprep.subr.bf16.mxu0 0
    %1055 = vmatpush1.bf16.msra.mxu0 %v1030
    %1056 = vmatprep.subr.bf16.mxu0 0
    %1057 = vmatpush1.bf16.msra.mxu0 %v1029
    %1058 = vmatprep.subr.bf16.mxu0 0
    %1059 = vmatpush1.bf16.msra.mxu0 %v1028
    %1060 = vmatprep.subr.bf16.mxu0 0
    %1061 = vmatpush2.bf16.msra.mxu0 0
    %1062 = vmatprep.subr.bf16.mxu0 0
    %1063 = vmatpush2.bf16.msra.mxu0 0
    %1064 = vmatprep.subr.bf16.mxu0 0
    %1065 = vmatpush2.bf16.msra.mxu0 0
    %1066 = vmatprep.subr.bf16.mxu0 0
    %1067 = vmatpush2.bf16.msra.mxu0 0
    %1068 = vmatprep.subr.bf16.mxu0 0
    %1069 = vmatpush2.bf16.msra.mxu0 0
    %1070 = vmatprep.subr.bf16.mxu0 0
    %1071 = vmatpush2.bf16.msra.mxu0 0
    %1072 = vmatprep.subr.bf16.mxu0 0
    %1073 = vmatpush2.bf16.msra.mxu0 0
    %1074 = vmatprep.subr.bf16.mxu0 0
    %1075 = vmatpush2.bf16.msra.mxu0 0
    %1076 = vmatprep.mubr.bf16.mxu0 0
    %1077 = vmatmul.mubr.bf16.gmra.mxu0 %v972
    %v1078 = vpop.f32.mrf.mxu0
    %v1079 = vadd.f32 %v994, %v1078
    %v1080 = vpop.f32.mrf.mxu0
    %v1081 = vpop.f32.mrf.mxu0
    %v1082 = vpop.f32.mrf.mxu0
    %1083 = vdwg.mxu0
    %vm1084 = vcmask 25600
    %v1085 = vsel %vm1084, %v1079, -inf
    %1086 = vmax.xlane.f32.xlu0 %v1085
    %v1087 = vpop.xlane.xlu0 %1086
    %v1088 = vsub.f32 %v1079, %v1087
    %v1089 = vmul.f32 %v1088, 1.442695
    %v1090 = vpow.pop %v1089
    %v1091 = vsel %vm1084, %v1090, 0.0
    %1092 = vadd.xlane.f32.xlu0 %v1091
    %v1093 = vpop.xlane.xlu0 %1092
    %v1094 = vrcp.pop %v1093
    %v1095 = vmul.f32 %v1090, %v1094
    %1096 = vst.msk [vmem:[#allocation4] sm:$0x3] %vm1084, %v1095
    // Predicated region
    $region62: #{gated_mil_forward.1} parent=1 // pred_check
      _
    $region63: #{gated_mil_forward.1} parent=1 // pred_check_branch
      %1098 = sbr.rel (0) target = $region65
    $region64: #{gated_mil_forward.1} parent=1 // pred_region
      %s1100 = ssub.s32 32, 32
      %1101 = vsyncadd [#allocation3], %s1100
      %s1103 = sshll.u32 [#allocation2], 4
      %s1104 = int_to_ptr.vmem [resolvable:$true] %s1103
      %1106 = dma.vmem_to_hbm [thread:$0]  %s1104, 32, %s15, [#allocation3]
    $region65: #{gated_mil_forward.1} parent=1 // pred_fallthru
      _
    // Predicated region
    $region66: #{gated_mil_forward.1} parent=1 // pred_check
      _
    $region67: #{gated_mil_forward.1} parent=1 // pred_check_branch
      %1108 = sbr.rel (0) target = $region69
    $region68: #{gated_mil_forward.1} parent=1 // pred_region
      %s1110 = ssub.s32 32, 32
      %1111 = vsyncadd [#allocation5], %s1110
      %s1113 = sshll.u32 [#allocation4], 4
      %s1114 = int_to_ptr.vmem [resolvable:$true] %s1113
      %1116 = dma.vmem_to_hbm [thread:$0]  %s1114, 32, %s16, [#allocation5]
    $region69: #{gated_mil_forward.1} parent=1 // pred_fallthru
      _
    // Predicated region
    $region70: #{gated_mil_forward.1} parent=1 // pred_check
      _
    $region71: #{gated_mil_forward.1} parent=1 // pred_check_branch
      %1118 = sbr.rel (0) target = $region73
    $region72: #{gated_mil_forward.1} parent=1 // pred_region
      %1119 = dma.done [#allocation3], 32
    $region73: #{gated_mil_forward.1} parent=1 // pred_fallthru
      _
    // Predicated region
    $region74: #{gated_mil_forward.1} parent=1 // pred_check
      _
    $region75: #{gated_mil_forward.1} parent=1 // pred_check_branch
      %1121 = sbr.rel (0) target = $region77
    $region76: #{gated_mil_forward.1} parent=1 // pred_region
      %1122 = dma.done [#allocation5], 32
    $region77: #{gated_mil_forward.1} parent=1 // pred_fallthru
      _
    %1123 = vsyncpa [#allocation3], 1
    %1124 = vsyncpa [#allocation5], 1

</llo_original>
